<compile_context>
chip_gen: v7x
topology: tpu7x:2x2x1
jax: 0.10.0
libtpu: 0.0.40
codegen_flags: <defaults>
</compile_context>

<pallas_src>
import functools

import jax
import jax.numpy as jnp
from jax.experimental import pallas as pl
from jax.experimental.pallas import tpu as pltpu

ENC_DIM = 32     # encoder feature dim
HID_DIM = 64     # head hidden dim
OUT_DIM = 16     # head output dim
DEC_C   = 4      # decoder output channels

_VMEM = functools.partial(pl.BlockSpec, memory_space=pltpu.MemorySpace.VMEM)
_SMEM = functools.partial(pl.BlockSpec, memory_space=pltpu.MemorySpace.SMEM)


def _round_up(n, m):
    return ((n + m - 1) // m) * m


# ------------------------------ Pallas kernel ------------------------------- #
def _fused_multicrop_kernel(group_meta, C, *refs):
    """All groups' encoders + last-group 1x1-conv decoder + head MLP, fused.

    group_meta: static tuple of (B_g, HW_g) per resolution group.
    refs (in order):
      x_g            (B_g*C, HW_g)   bf16, one per group (row-aligned slabs)
      w_enc          (C, ENC_DIM)    f32 VMEM
      b_enc          (1, ENC_DIM)    f32 VMEM
      w_dec          (DEC_C, C)      f32 SMEM (scalars)
      b_dec          (DEC_C,)        f32 SMEM
      w1             (ENC_DIM, HID)  bf16 VMEM
      b1             (1, HID)        f32 VMEM
      w2             (HID, OUT)      bf16 VMEM
      b2             (1, OUT)        f32 VMEM
      head_ref       (N_total, OUT)  f32 output (packed rows)
      dec_ref        (B_last*DEC_C, HW_last) bf16 output (row-aligned)
      feats_scr      (N_pad, ENC_DIM) f32 VMEM scratch (8-aligned group slots)
    """
    n_groups = len(group_meta)
    x_refs, rest = refs[:n_groups], refs[n_groups:]
    (w_enc_ref, b_enc_ref, w_dec_ref, b_dec_ref,
     w1_ref, b1_ref, w2_ref, b2_ref, head_ref, dec_ref, feats_scr) = rest

    # Zero the feats scratch once so the 8-row alignment padding rows are clean.
    feats_scr[...] = jnp.zeros_like(feats_scr)

    w_enc = w_enc_ref[...]            # (C, E) f32
    b_enc = b_enc_ref[...]            # (1, E) f32

    pad_off = 0
    for g, (B, HW) in enumerate(group_meta):
        is_last = (g == n_groups - 1)
        inv_hw = 1.0 / float(HW)

        # Single pass over the group's slab: load once, upcast once (VPU),
        # reuse the same vregs for GAP and the decoder FMAs.
        xg = x_refs[g][...].astype(jnp.float32)                 # (B*C, HW)

        # ---- encoder GAP: one vectorized lane-reduce over the whole slab ----
        pooled = jnp.sum(xg, axis=-1, keepdims=True) * inv_hw   # (B*C, 1)

        # ---- encoder linear: C(=4)-term VPU broadcast FMAs (no MXU) ----
        for b in range(B):
            enc_b = b_enc                                       # (1, E)
            for c in range(C):
                r = b * C + c
                enc_b = enc_b + pooled[r:r + 1, :] * w_enc[c:c + 1, :]
            # 8-aligned group slot in the feats scratch (no misaligned concat).
            feats_scr[pad_off + b:pad_off + b + 1, :] = enc_b

        # ---- decoder (1x1 conv), last group only; row-aligned bf16 stores ----
        if is_last:
            O = DEC_C
            for b in range(B):
                dec_acc = [None] * O
                for c in range(C):
                    row = xg[b * C + c:b * C + c + 1, :]        # (1, HW)
                    for o in range(O):
                        term = w_dec_ref[o, c] * row            # SMEM scalar FMA
                        dec_acc[o] = term if dec_acc[o] is None else dec_acc[o] + term
                for o in range(O):
                    dec_ref[b * O + o:b * O + o + 1, :] = (
                        dec_acc[o] + b_dec_ref[o]).astype(dec_ref.dtype)

        pad_off += _round_up(B, 8)

    # ---- head: 2-layer MLP on the padded feats slab (MXU, bf16 in / f32 acc) --
    feats = feats_scr[...].astype(jnp.bfloat16)                 # (N_pad, E)
    h = jnp.dot(feats, w1_ref[...],
                preferred_element_type=jnp.float32) + b1_ref[...]
    h = jax.nn.gelu(h)
    out_pad = jnp.dot(h.astype(jnp.bfloat16), w2_ref[...],
                      preferred_element_type=jnp.float32) + b2_ref[...]

    # Scatter the valid (non-padding) rows back into the packed output.
    nat_off, pad_off = 0, 0
    for (B, HW) in group_meta:
        head_ref[nat_off:nat_off + B, :] = out_pad[pad_off:pad_off + B, :]
        nat_off += B
        pad_off += _round_up(B, 8)


# --------------------------- MultiCropWrapper.forward ----------------------- #
def multi_crop_forward(x, params):
    if not isinstance(x, (list, tuple)):
        x = [x]

    # TODO(synk): torch.unique_consecutive/cumsum over crop resolutions is pure
    # host-side shape metadata; it stays in Python (no device op needed).
    res = [int(inp.shape[-1]) for inp in x]
    idx_crops = []
    for i in range(1, len(res) + 1):
        if i == len(res) or res[i] != res[i - 1]:
            idx_crops.append(i)

    # Group same-resolution crops; NCHW -> (B*C, H*W) is a pure reshape of a
    # contiguous tensor (row-aligned, lane-dense, no XLA transpose).  Stream in
    # bf16 to halve HBM traffic; the kernel accumulates in f32.
    groups, start = [], 0
    for end in idx_crops:
        g = jnp.concatenate(x[start:end], axis=0)
        B, C, H, W = g.shape
        groups.append((g.astype(jnp.bfloat16).reshape(B * C, H * W), B, C, H, W))
        start = end

    C = groups[0][2]
    group_meta = tuple((B, H * W) for (_, B, _, H, W) in groups)
    n_total = sum(B for (B, _) in group_meta)
    n_pad = sum(_round_up(B, 8) for (B, _) in group_meta)
    B_last, HW_last = group_meta[-1]
    H_last, W_last = groups[-1][3], groups[-1][4]

    in_specs = ([_VMEM()] * len(groups)                 # x slabs (bf16)
                + [_VMEM(), _VMEM(),                    # w_enc, b_enc
                   _SMEM(), _SMEM(),                    # w_dec, b_dec (scalars)
                   _VMEM(), _VMEM(), _VMEM(), _VMEM()])  # w1, b1, w2, b2

    args = ([g2d for (g2d, *_rest) in groups]
            + [params["w_enc"], params["b_enc"],
               params["w_dec"], params["b_dec"],
               params["w1"].astype(jnp.bfloat16), params["b1"],
               params["w2"].astype(jnp.bfloat16), params["b2"]])

    head_out, dec_flat = pl.pallas_call(
        functools.partial(_fused_multicrop_kernel, group_meta, C),
        out_shape=(jax.ShapeDtypeStruct((n_total, OUT_DIM), jnp.float32),
                   jax.ShapeDtypeStruct((B_last * DEC_C, HW_last), jnp.bfloat16)),
        in_specs=in_specs,
        out_specs=(_VMEM(), _VMEM()),
        scratch_shapes=[pltpu.VMEM((n_pad, ENC_DIM), jnp.float32)],
    )(*args)

    decoder_out = dec_flat.reshape(B_last, DEC_C, H_last, W_last)   # free reshape
    return head_out, decoder_out


# ------------------------------ pure-JAX reference -------------------------- #
def reference_forward(x, params):
    if not isinstance(x, (list, tuple)):
        x = [x]
    res = [int(inp.shape[-1]) for inp in x]
    idx_crops = []
    for i in range(1, len(res) + 1):
        if i == len(res) or res[i] != res[i - 1]:
            idx_crops.append(i)
    start, feats, dec = 0, [], None
    for end in idx_crops:
        g = jnp.concatenate(x[start:end], axis=0)
        pooled = jnp.mean(g, axis=(2, 3))                               # (B, C)
        feats.append(pooled @ params["w_enc"] + params["b_enc"])
        dec = (jnp.einsum("oc,bchw->bohw", params["w_dec"], g)
               + params["b_dec"][None, :, None, None])
        start = end
    out = jnp.concatenate(feats, axis=0)
    h = jax.nn.gelu(out @ params["w1"] + params["b1"])
    return h @ params["w2"] + params["b2"], dec


# ---------------------------------- main ------------------------------------ #
def make_params(channels):
    key = jax.random.PRNGKey(0)
    ks = jax.random.split(key, 8)
    s = 0.05
    return {
        "w_enc": s * jax.random.normal(ks[0], (channels, ENC_DIM), jnp.float32),
        "b_enc": s * jax.random.normal(ks[1], (1, ENC_DIM), jnp.float32),
        "w_dec": s * jax.random.normal(ks[2], (DEC_C, channels), jnp.float32),
        "b_dec": s * jax.random.normal(ks[3], (DEC_C,), jnp.float32),
        "w1":    s * jax.random.normal(ks[4], (ENC_DIM, HID_DIM), jnp.float32),
        "b1":    s * jax.random.normal(ks[5], (1, HID_DIM), jnp.float32),
        "w2":    s * jax.random.normal(ks[6], (HID_DIM, OUT_DIM), jnp.float32),
        "b2":    s * jax.random.normal(ks[7], (1, OUT_DIM), jnp.float32),
    }


if __name__ == "__main__":
    key = jax.random.PRNGKey(0)
    k1, k2, k3, k4 = jax.random.split(key, 4)

    batch, channels = 2, 4
    # multi-crop input: two "global" crops at 16x16, two "local" crops at 8x8
    x = [
        jax.random.normal(k1, (batch, channels, 16, 16), jnp.float32),
        jax.random.normal(k2, (batch, channels, 16, 16), jnp.float32),
        jax.random.normal(k3, (batch, channels, 8, 8), jnp.float32),
        jax.random.normal(k4, (batch, channels, 8, 8), jnp.float32),
    ]
    params = make_params(channels)

    head_out, decoder_out = multi_crop_forward(x, params)
    jax.block_until_ready(head_out)
    jax.block_until_ready(decoder_out)

    assert head_out.shape == (len(x) * batch, OUT_DIM)
    assert decoder_out.shape == (2 * batch, DEC_C, 8, 8)   # from the last (8x8) group

    head_expected, dec_expected = reference_forward(x, params)
    # bf16 streaming (x slabs, head matmul inputs, decoder store) bounds the
    # achievable agreement with the f32 reference at the ~1e-3 level; tolerances
    # sit just above that (previous 3e-2 was far looser than the numerics used).
    assert float(jnp.max(jnp.abs(head_out - head_expected))) < 3e-3
    assert float(jnp.max(jnp.abs(decoder_out.astype(jnp.float32) - dec_expected))) < 8e-3

    print("KERNEL_OK")
</pallas_src>

<mosaic_0001>
module attributes {stable_mosaic.version = 11 : i64} {
  func.func @_fused_multicrop_kernel(%arg0: memref<16x256xbf16, #tpu.memory_space<vmem>>, %arg1: memref<16x64xbf16, #tpu.memory_space<vmem>>, %arg2: memref<4x32xf32, #tpu.memory_space<vmem>>, %arg3: memref<1x32xf32, #tpu.memory_space<vmem>>, %arg4: memref<4x4xf32, #tpu.memory_space<smem>>, %arg5: memref<4xf32, #tpu.memory_space<smem>>, %arg6: memref<32x64xbf16, #tpu.memory_space<vmem>>, %arg7: memref<1x64xf32, #tpu.memory_space<vmem>>, %arg8: memref<64x16xbf16, #tpu.memory_space<vmem>>, %arg9: memref<1x16xf32, #tpu.memory_space<vmem>>, %arg10: memref<8x16xf32, #tpu.memory_space<vmem>>, %arg11: memref<16x64xbf16, #tpu.memory_space<vmem>>, %arg12: memref<16x32xf32, #tpu.memory_space<vmem>>) attributes {dimension_semantics = [], scalar_prefetch = 0 : i64, scratch_operands = 1 : i64, tpu.core_type = #tpu.core_type<tc>} {
    %cst = arith.constant 0.000000e+00 : f32
    %0 = vector.broadcast %cst : f32 to vector<16x32xf32>
    %c0 = arith.constant 0 : index
    %c0_0 = arith.constant 0 : index
    %1 = vector.load %arg12[%c0, %c0_0] : memref<16x32xf32, #tpu.memory_space<vmem>>, vector<16x32xf32>
    tpu.vector_store %arg12[%c0, %c0_0], %0 {strides = array<i32>} : memref<16x32xf32, #tpu.memory_space<vmem>>, vector<16x32xf32>,
    %c0_1 = arith.constant 0 : index
    %c0_2 = arith.constant 0 : index
    %2 = vector.load %arg2[%c0_1, %c0_2] : memref<4x32xf32, #tpu.memory_space<vmem>>, vector<4x32xf32>
    %c0_3 = arith.constant 0 : index
    %c0_4 = arith.constant 0 : index
    %3 = vector.load %arg3[%c0_3, %c0_4] : memref<1x32xf32, #tpu.memory_space<vmem>>, vector<1x32xf32>
    %c0_5 = arith.constant 0 : index
    %c0_6 = arith.constant 0 : index
    %4 = vector.load %arg0[%c0_5, %c0_6] : memref<16x256xbf16, #tpu.memory_space<vmem>>, vector<16x256xbf16>
    %5 = arith.extf %4 : vector<16x256xbf16> to vector<16x256xf32>
    %cst_7 = arith.constant dense<0.000000e+00> : vector<16xf32>
    %6 = vector.multi_reduction <add>, %5, %cst_7 [1] : vector<16x256xf32> to vector<16xf32>
    %7 = vector.shape_cast %6 : vector<16xf32> to vector<16x1xf32>
    %cst_8 = arith.constant 3.906250e-03 : f32
    %8 = vector.broadcast %cst_8 : f32 to vector<16x1xf32>
    %9 = arith.mulf %7, %8 : vector<16x1xf32>
    %10 = vector.extract_strided_slice %9 {offsets = [0, 0], sizes = [1, 1], strides = [1, 1]} : vector<16x1xf32> to vector<1x1xf32>
    %11 = vector.extract_strided_slice %2 {offsets = [0, 0], sizes = [1, 32], strides = [1, 1]} : vector<4x32xf32> to vector<1x32xf32>
    %12 = vector.broadcast %10 : vector<1x1xf32> to vector<1x32xf32>
    %13 = arith.mulf %12, %11 : vector<1x32xf32>
    %14 = arith.addf %3, %13 : vector<1x32xf32>
    %15 = vector.extract_strided_slice %9 {offsets = [1, 0], sizes = [1, 1], strides = [1, 1]} : vector<16x1xf32> to vector<1x1xf32>
    %16 = vector.extract_strided_slice %2 {offsets = [1, 0], sizes = [1, 32], strides = [1, 1]} : vector<4x32xf32> to vector<1x32xf32>
    %17 = vector.broadcast %15 : vector<1x1xf32> to vector<1x32xf32>
    %18 = arith.mulf %17, %16 : vector<1x32xf32>
    %19 = arith.addf %14, %18 : vector<1x32xf32>
    %20 = vector.extract_strided_slice %9 {offsets = [2, 0], sizes = [1, 1], strides = [1, 1]} : vector<16x1xf32> to vector<1x1xf32>
    %21 = vector.extract_strided_slice %2 {offsets = [2, 0], sizes = [1, 32], strides = [1, 1]} : vector<4x32xf32> to vector<1x32xf32>
    %22 = vector.broadcast %20 : vector<1x1xf32> to vector<1x32xf32>
    %23 = arith.mulf %22, %21 : vector<1x32xf32>
    %24 = arith.addf %19, %23 : vector<1x32xf32>
    %25 = vector.extract_strided_slice %9 {offsets = [3, 0], sizes = [1, 1], strides = [1, 1]} : vector<16x1xf32> to vector<1x1xf32>
    %26 = vector.extract_strided_slice %2 {offsets = [3, 0], sizes = [1, 32], strides = [1, 1]} : vector<4x32xf32> to vector<1x32xf32>
    %27 = vector.broadcast %25 : vector<1x1xf32> to vector<1x32xf32>
    %28 = arith.mulf %27, %26 : vector<1x32xf32>
    %29 = arith.addf %24, %28 : vector<1x32xf32>
    %c0_9 = arith.constant 0 : index
    %c0_10 = arith.constant 0 : index
    %30 = vector.load %arg12[%c0_9, %c0_10] : memref<16x32xf32, #tpu.memory_space<vmem>>, vector<1x32xf32>
    tpu.vector_store %arg12[%c0_9, %c0_10], %29 {strides = array<i32>} : memref<16x32xf32, #tpu.memory_space<vmem>>, vector<1x32xf32>,
    %31 = vector.extract_strided_slice %9 {offsets = [4, 0], sizes = [1, 1], strides = [1, 1]} : vector<16x1xf32> to vector<1x1xf32>
    %32 = vector.extract_strided_slice %2 {offsets = [0, 0], sizes = [1, 32], strides = [1, 1]} : vector<4x32xf32> to vector<1x32xf32>
    %33 = vector.broadcast %31 : vector<1x1xf32> to vector<1x32xf32>
    %34 = arith.mulf %33, %32 : vector<1x32xf32>
    %35 = arith.addf %3, %34 : vector<1x32xf32>
    %36 = vector.extract_strided_slice %9 {offsets = [5, 0], sizes = [1, 1], strides = [1, 1]} : vector<16x1xf32> to vector<1x1xf32>
    %37 = vector.extract_strided_slice %2 {offsets = [1, 0], sizes = [1, 32], strides = [1, 1]} : vector<4x32xf32> to vector<1x32xf32>
    %38 = vector.broadcast %36 : vector<1x1xf32> to vector<1x32xf32>
    %39 = arith.mulf %38, %37 : vector<1x32xf32>
    %40 = arith.addf %35, %39 : vector<1x32xf32>
    %41 = vector.extract_strided_slice %9 {offsets = [6, 0], sizes = [1, 1], strides = [1, 1]} : vector<16x1xf32> to vector<1x1xf32>
    %42 = vector.extract_strided_slice %2 {offsets = [2, 0], sizes = [1, 32], strides = [1, 1]} : vector<4x32xf32> to vector<1x32xf32>
    %43 = vector.broadcast %41 : vector<1x1xf32> to vector<1x32xf32>
    %44 = arith.mulf %43, %42 : vector<1x32xf32>
    %45 = arith.addf %40, %44 : vector<1x32xf32>
    %46 = vector.extract_strided_slice %9 {offsets = [7, 0], sizes = [1, 1], strides = [1, 1]} : vector<16x1xf32> to vector<1x1xf32>
    %47 = vector.extract_strided_slice %2 {offsets = [3, 0], sizes = [1, 32], strides = [1, 1]} : vector<4x32xf32> to vector<1x32xf32>
    %48 = vector.broadcast %46 : vector<1x1xf32> to vector<1x32xf32>
    %49 = arith.mulf %48, %47 : vector<1x32xf32>
    %50 = arith.addf %45, %49 : vector<1x32xf32>
    %c1 = arith.constant 1 : index
    %c0_11 = arith.constant 0 : index
    %51 = vector.load %arg12[%c1, %c0_11] : memref<16x32xf32, #tpu.memory_space<vmem>>, vector<1x32xf32>
    tpu.vector_store %arg12[%c1, %c0_11], %50 {strides = array<i32>} : memref<16x32xf32, #tpu.memory_space<vmem>>, vector<1x32xf32>,
    %52 = vector.extract_strided_slice %9 {offsets = [8, 0], sizes = [1, 1], strides = [1, 1]} : vector<16x1xf32> to vector<1x1xf32>
    %53 = vector.extract_strided_slice %2 {offsets = [0, 0], sizes = [1, 32], strides = [1, 1]} : vector<4x32xf32> to vector<1x32xf32>
    %54 = vector.broadcast %52 : vector<1x1xf32> to vector<1x32xf32>
    %55 = arith.mulf %54, %53 : vector<1x32xf32>
    %56 = arith.addf %3, %55 : vector<1x32xf32>
    %57 = vector.extract_strided_slice %9 {offsets = [9, 0], sizes = [1, 1], strides = [1, 1]} : vector<16x1xf32> to vector<1x1xf32>
    %58 = vector.extract_strided_slice %2 {offsets = [1, 0], sizes = [1, 32], strides = [1, 1]} : vector<4x32xf32> to vector<1x32xf32>
    %59 = vector.broadcast %57 : vector<1x1xf32> to vector<1x32xf32>
    %60 = arith.mulf %59, %58 : vector<1x32xf32>
    %61 = arith.addf %56, %60 : vector<1x32xf32>
    %62 = vector.extract_strided_slice %9 {offsets = [10, 0], sizes = [1, 1], strides = [1, 1]} : vector<16x1xf32> to vector<1x1xf32>
    %63 = vector.extract_strided_slice %2 {offsets = [2, 0], sizes = [1, 32], strides = [1, 1]} : vector<4x32xf32> to vector<1x32xf32>
    %64 = vector.broadcast %62 : vector<1x1xf32> to vector<1x32xf32>
    %65 = arith.mulf %64, %63 : vector<1x32xf32>
    %66 = arith.addf %61, %65 : vector<1x32xf32>
    %67 = vector.extract_strided_slice %9 {offsets = [11, 0], sizes = [1, 1], strides = [1, 1]} : vector<16x1xf32> to vector<1x1xf32>
    %68 = vector.extract_strided_slice %2 {offsets = [3, 0], sizes = [1, 32], strides = [1, 1]} : vector<4x32xf32> to vector<1x32xf32>
    %69 = vector.broadcast %67 : vector<1x1xf32> to vector<1x32xf32>
    %70 = arith.mulf %69, %68 : vector<1x32xf32>
    %71 = arith.addf %66, %70 : vector<1x32xf32>
    %c2 = arith.constant 2 : index
    %c0_12 = arith.constant 0 : index
    %72 = vector.load %arg12[%c2, %c0_12] : memref<16x32xf32, #tpu.memory_space<vmem>>, vector<1x32xf32>
    tpu.vector_store %arg12[%c2, %c0_12], %71 {strides = array<i32>} : memref<16x32xf32, #tpu.memory_space<vmem>>, vector<1x32xf32>,
    %73 = vector.extract_strided_slice %9 {offsets = [12, 0], sizes = [1, 1], strides = [1, 1]} : vector<16x1xf32> to vector<1x1xf32>
    %74 = vector.extract_strided_slice %2 {offsets = [0, 0], sizes = [1, 32], strides = [1, 1]} : vector<4x32xf32> to vector<1x32xf32>
    %75 = vector.broadcast %73 : vector<1x1xf32> to vector<1x32xf32>
    %76 = arith.mulf %75, %74 : vector<1x32xf32>
    %77 = arith.addf %3, %76 : vector<1x32xf32>
    %78 = vector.extract_strided_slice %9 {offsets = [13, 0], sizes = [1, 1], strides = [1, 1]} : vector<16x1xf32> to vector<1x1xf32>
    %79 = vector.extract_strided_slice %2 {offsets = [1, 0], sizes = [1, 32], strides = [1, 1]} : vector<4x32xf32> to vector<1x32xf32>
    %80 = vector.broadcast %78 : vector<1x1xf32> to vector<1x32xf32>
    %81 = arith.mulf %80, %79 : vector<1x32xf32>
    %82 = arith.addf %77, %81 : vector<1x32xf32>
    %83 = vector.extract_strided_slice %9 {offsets = [14, 0], sizes = [1, 1], strides = [1, 1]} : vector<16x1xf32> to vector<1x1xf32>
    %84 = vector.extract_strided_slice %2 {offsets = [2, 0], sizes = [1, 32], strides = [1, 1]} : vector<4x32xf32> to vector<1x32xf32>
    %85 = vector.broadcast %83 : vector<1x1xf32> to vector<1x32xf32>
    %86 = arith.mulf %85, %84 : vector<1x32xf32>
    %87 = arith.addf %82, %86 : vector<1x32xf32>
    %88 = vector.extract_strided_slice %9 {offsets = [15, 0], sizes = [1, 1], strides = [1, 1]} : vector<16x1xf32> to vector<1x1xf32>
    %89 = vector.extract_strided_slice %2 {offsets = [3, 0], sizes = [1, 32], strides = [1, 1]} : vector<4x32xf32> to vector<1x32xf32>
    %90 = vector.broadcast %88 : vector<1x1xf32> to vector<1x32xf32>
    %91 = arith.mulf %90, %89 : vector<1x32xf32>
    %92 = arith.addf %87, %91 : vector<1x32xf32>
    %c3 = arith.constant 3 : index
    %c0_13 = arith.constant 0 : index
    %93 = vector.load %arg12[%c3, %c0_13] : memref<16x32xf32, #tpu.memory_space<vmem>>, vector<1x32xf32>
    tpu.vector_store %arg12[%c3, %c0_13], %92 {strides = array<i32>} : memref<16x32xf32, #tpu.memory_space<vmem>>, vector<1x32xf32>,
    %c0_14 = arith.constant 0 : index
    %c0_15 = arith.constant 0 : index
    %94 = vector.load %arg1[%c0_14, %c0_15] : memref<16x64xbf16, #tpu.memory_space<vmem>>, vector<16x64xbf16>
    %95 = arith.extf %94 : vector<16x64xbf16> to vector<16x64xf32>
    %cst_16 = arith.constant dense<0.000000e+00> : vector<16xf32>
    %96 = vector.multi_reduction <add>, %95, %cst_16 [1] : vector<16x64xf32> to vector<16xf32>
    %97 = vector.shape_cast %96 : vector<16xf32> to vector<16x1xf32>
    %cst_17 = arith.constant 1.562500e-02 : f32
    %98 = vector.broadcast %cst_17 : f32 to vector<16x1xf32>
    %99 = arith.mulf %97, %98 : vector<16x1xf32>
    %100 = vector.extract_strided_slice %99 {offsets = [0, 0], sizes = [1, 1], strides = [1, 1]} : vector<16x1xf32> to vector<1x1xf32>
    %101 = vector.extract_strided_slice %2 {offsets = [0, 0], sizes = [1, 32], strides = [1, 1]} : vector<4x32xf32> to vector<1x32xf32>
    %102 = vector.broadcast %100 : vector<1x1xf32> to vector<1x32xf32>
    %103 = arith.mulf %102, %101 : vector<1x32xf32>
    %104 = arith.addf %3, %103 : vector<1x32xf32>
    %105 = vector.extract_strided_slice %99 {offsets = [1, 0], sizes = [1, 1], strides = [1, 1]} : vector<16x1xf32> to vector<1x1xf32>
    %106 = vector.extract_strided_slice %2 {offsets = [1, 0], sizes = [1, 32], strides = [1, 1]} : vector<4x32xf32> to vector<1x32xf32>
    %107 = vector.broadcast %105 : vector<1x1xf32> to vector<1x32xf32>
    %108 = arith.mulf %107, %106 : vector<1x32xf32>
    %109 = arith.addf %104, %108 : vector<1x32xf32>
    %110 = vector.extract_strided_slice %99 {offsets = [2, 0], sizes = [1, 1], strides = [1, 1]} : vector<16x1xf32> to vector<1x1xf32>
    %111 = vector.extract_strided_slice %2 {offsets = [2, 0], sizes = [1, 32], strides = [1, 1]} : vector<4x32xf32> to vector<1x32xf32>
    %112 = vector.broadcast %110 : vector<1x1xf32> to vector<1x32xf32>
    %113 = arith.mulf %112, %111 : vector<1x32xf32>
    %114 = arith.addf %109, %113 : vector<1x32xf32>
    %115 = vector.extract_strided_slice %99 {offsets = [3, 0], sizes = [1, 1], strides = [1, 1]} : vector<16x1xf32> to vector<1x1xf32>
    %116 = vector.extract_strided_slice %2 {offsets = [3, 0], sizes = [1, 32], strides = [1, 1]} : vector<4x32xf32> to vector<1x32xf32>
    %117 = vector.broadcast %115 : vector<1x1xf32> to vector<1x32xf32>
    %118 = arith.mulf %117, %116 : vector<1x32xf32>
    %119 = arith.addf %114, %118 : vector<1x32xf32>
    %c8 = arith.constant 8 : index
    %c0_18 = arith.constant 0 : index
    %120 = vector.load %arg12[%c8, %c0_18] : memref<16x32xf32, #tpu.memory_space<vmem>>, vector<1x32xf32>
    tpu.vector_store %arg12[%c8, %c0_18], %119 {strides = array<i32>} : memref<16x32xf32, #tpu.memory_space<vmem>>, vector<1x32xf32>,
    %121 = vector.extract_strided_slice %99 {offsets = [4, 0], sizes = [1, 1], strides = [1, 1]} : vector<16x1xf32> to vector<1x1xf32>
    %122 = vector.extract_strided_slice %2 {offsets = [0, 0], sizes = [1, 32], strides = [1, 1]} : vector<4x32xf32> to vector<1x32xf32>
    %123 = vector.broadcast %121 : vector<1x1xf32> to vector<1x32xf32>
    %124 = arith.mulf %123, %122 : vector<1x32xf32>
    %125 = arith.addf %3, %124 : vector<1x32xf32>
    %126 = vector.extract_strided_slice %99 {offsets = [5, 0], sizes = [1, 1], strides = [1, 1]} : vector<16x1xf32> to vector<1x1xf32>
    %127 = vector.extract_strided_slice %2 {offsets = [1, 0], sizes = [1, 32], strides = [1, 1]} : vector<4x32xf32> to vector<1x32xf32>
    %128 = vector.broadcast %126 : vector<1x1xf32> to vector<1x32xf32>
    %129 = arith.mulf %128, %127 : vector<1x32xf32>
    %130 = arith.addf %125, %129 : vector<1x32xf32>
    %131 = vector.extract_strided_slice %99 {offsets = [6, 0], sizes = [1, 1], strides = [1, 1]} : vector<16x1xf32> to vector<1x1xf32>
    %132 = vector.extract_strided_slice %2 {offsets = [2, 0], sizes = [1, 32], strides = [1, 1]} : vector<4x32xf32> to vector<1x32xf32>
    %133 = vector.broadcast %131 : vector<1x1xf32> to vector<1x32xf32>
    %134 = arith.mulf %133, %132 : vector<1x32xf32>
    %135 = arith.addf %130, %134 : vector<1x32xf32>
    %136 = vector.extract_strided_slice %99 {offsets = [7, 0], sizes = [1, 1], strides = [1, 1]} : vector<16x1xf32> to vector<1x1xf32>
    %137 = vector.extract_strided_slice %2 {offsets = [3, 0], sizes = [1, 32], strides = [1, 1]} : vector<4x32xf32> to vector<1x32xf32>
    %138 = vector.broadcast %136 : vector<1x1xf32> to vector<1x32xf32>
    %139 = arith.mulf %138, %137 : vector<1x32xf32>
    %140 = arith.addf %135, %139 : vector<1x32xf32>
    %c9 = arith.constant 9 : index
    %c0_19 = arith.constant 0 : index
    %141 = vector.load %arg12[%c9, %c0_19] : memref<16x32xf32, #tpu.memory_space<vmem>>, vector<1x32xf32>
    tpu.vector_store %arg12[%c9, %c0_19], %140 {strides = array<i32>} : memref<16x32xf32, #tpu.memory_space<vmem>>, vector<1x32xf32>,
    %142 = vector.extract_strided_slice %99 {offsets = [8, 0], sizes = [1, 1], strides = [1, 1]} : vector<16x1xf32> to vector<1x1xf32>
    %143 = vector.extract_strided_slice %2 {offsets = [0, 0], sizes = [1, 32], strides = [1, 1]} : vector<4x32xf32> to vector<1x32xf32>
    %144 = vector.broadcast %142 : vector<1x1xf32> to vector<1x32xf32>
    %145 = arith.mulf %144, %143 : vector<1x32xf32>
    %146 = arith.addf %3, %145 : vector<1x32xf32>
    %147 = vector.extract_strided_slice %99 {offsets = [9, 0], sizes = [1, 1], strides = [1, 1]} : vector<16x1xf32> to vector<1x1xf32>
    %148 = vector.extract_strided_slice %2 {offsets = [1, 0], sizes = [1, 32], strides = [1, 1]} : vector<4x32xf32> to vector<1x32xf32>
    %149 = vector.broadcast %147 : vector<1x1xf32> to vector<1x32xf32>
    %150 = arith.mulf %149, %148 : vector<1x32xf32>
    %151 = arith.addf %146, %150 : vector<1x32xf32>
    %152 = vector.extract_strided_slice %99 {offsets = [10, 0], sizes = [1, 1], strides = [1, 1]} : vector<16x1xf32> to vector<1x1xf32>
    %153 = vector.extract_strided_slice %2 {offsets = [2, 0], sizes = [1, 32], strides = [1, 1]} : vector<4x32xf32> to vector<1x32xf32>
    %154 = vector.broadcast %152 : vector<1x1xf32> to vector<1x32xf32>
    %155 = arith.mulf %154, %153 : vector<1x32xf32>
    %156 = arith.addf %151, %155 : vector<1x32xf32>
    %157 = vector.extract_strided_slice %99 {offsets = [11, 0], sizes = [1, 1], strides = [1, 1]} : vector<16x1xf32> to vector<1x1xf32>
    %158 = vector.extract_strided_slice %2 {offsets = [3, 0], sizes = [1, 32], strides = [1, 1]} : vector<4x32xf32> to vector<1x32xf32>
    %159 = vector.broadcast %157 : vector<1x1xf32> to vector<1x32xf32>
    %160 = arith.mulf %159, %158 : vector<1x32xf32>
    %161 = arith.addf %156, %160 : vector<1x32xf32>
    %c10 = arith.constant 10 : index
    %c0_20 = arith.constant 0 : index
    %162 = vector.load %arg12[%c10, %c0_20] : memref<16x32xf32, #tpu.memory_space<vmem>>, vector<1x32xf32>
    tpu.vector_store %arg12[%c10, %c0_20], %161 {strides = array<i32>} : memref<16x32xf32, #tpu.memory_space<vmem>>, vector<1x32xf32>,
    %163 = vector.extract_strided_slice %99 {offsets = [12, 0], sizes = [1, 1], strides = [1, 1]} : vector<16x1xf32> to vector<1x1xf32>
    %164 = vector.extract_strided_slice %2 {offsets = [0, 0], sizes = [1, 32], strides = [1, 1]} : vector<4x32xf32> to vector<1x32xf32>
    %165 = vector.broadcast %163 : vector<1x1xf32> to vector<1x32xf32>
    %166 = arith.mulf %165, %164 : vector<1x32xf32>
    %167 = arith.addf %3, %166 : vector<1x32xf32>
    %168 = vector.extract_strided_slice %99 {offsets = [13, 0], sizes = [1, 1], strides = [1, 1]} : vector<16x1xf32> to vector<1x1xf32>
    %169 = vector.extract_strided_slice %2 {offsets = [1, 0], sizes = [1, 32], strides = [1, 1]} : vector<4x32xf32> to vector<1x32xf32>
    %170 = vector.broadcast %168 : vector<1x1xf32> to vector<1x32xf32>
    %171 = arith.mulf %170, %169 : vector<1x32xf32>
    %172 = arith.addf %167, %171 : vector<1x32xf32>
    %173 = vector.extract_strided_slice %99 {offsets = [14, 0], sizes = [1, 1], strides = [1, 1]} : vector<16x1xf32> to vector<1x1xf32>
    %174 = vector.extract_strided_slice %2 {offsets = [2, 0], sizes = [1, 32], strides = [1, 1]} : vector<4x32xf32> to vector<1x32xf32>
    %175 = vector.broadcast %173 : vector<1x1xf32> to vector<1x32xf32>
    %176 = arith.mulf %175, %174 : vector<1x32xf32>
    %177 = arith.addf %172, %176 : vector<1x32xf32>
    %178 = vector.extract_strided_slice %99 {offsets = [15, 0], sizes = [1, 1], strides = [1, 1]} : vector<16x1xf32> to vector<1x1xf32>
    %179 = vector.extract_strided_slice %2 {offsets = [3, 0], sizes = [1, 32], strides = [1, 1]} : vector<4x32xf32> to vector<1x32xf32>
    %180 = vector.broadcast %178 : vector<1x1xf32> to vector<1x32xf32>
    %181 = arith.mulf %180, %179 : vector<1x32xf32>
    %182 = arith.addf %177, %181 : vector<1x32xf32>
    %c11 = arith.constant 11 : index
    %c0_21 = arith.constant 0 : index
    %183 = vector.load %arg12[%c11, %c0_21] : memref<16x32xf32, #tpu.memory_space<vmem>>, vector<1x32xf32>
    tpu.vector_store %arg12[%c11, %c0_21], %182 {strides = array<i32>} : memref<16x32xf32, #tpu.memory_space<vmem>>, vector<1x32xf32>,
    %184 = vector.extract_strided_slice %95 {offsets = [0, 0], sizes = [1, 64], strides = [1, 1]} : vector<16x64xf32> to vector<1x64xf32>
    %c0_22 = arith.constant 0 : index
    %c0_23 = arith.constant 0 : index
    %185 = memref.load %arg4[%c0_22, %c0_23] : memref<4x4xf32, #tpu.memory_space<smem>>
    %186 = vector.broadcast %185 : f32 to vector<1x64xf32>
    %187 = arith.mulf %186, %184 : vector<1x64xf32>
    %c1_24 = arith.constant 1 : index
    %c0_25 = arith.constant 0 : index
    %188 = memref.load %arg4[%c1_24, %c0_25] : memref<4x4xf32, #tpu.memory_space<smem>>
    %189 = vector.broadcast %188 : f32 to vector<1x64xf32>
    %190 = arith.mulf %189, %184 : vector<1x64xf32>
    %c2_26 = arith.constant 2 : index
    %c0_27 = arith.constant 0 : index
    %191 = memref.load %arg4[%c2_26, %c0_27] : memref<4x4xf32, #tpu.memory_space<smem>>
    %192 = vector.broadcast %191 : f32 to vector<1x64xf32>
    %193 = arith.mulf %192, %184 : vector<1x64xf32>
    %c3_28 = arith.constant 3 : index
    %c0_29 = arith.constant 0 : index
    %194 = memref.load %arg4[%c3_28, %c0_29] : memref<4x4xf32, #tpu.memory_space<smem>>
    %195 = vector.broadcast %194 : f32 to vector<1x64xf32>
    %196 = arith.mulf %195, %184 : vector<1x64xf32>
    %197 = vector.extract_strided_slice %95 {offsets = [1, 0], sizes = [1, 64], strides = [1, 1]} : vector<16x64xf32> to vector<1x64xf32>
    %c0_30 = arith.constant 0 : index
    %c1_31 = arith.constant 1 : index
    %198 = memref.load %arg4[%c0_30, %c1_31] : memref<4x4xf32, #tpu.memory_space<smem>>
    %199 = vector.broadcast %198 : f32 to vector<1x64xf32>
    %200 = arith.mulf %199, %197 : vector<1x64xf32>
    %201 = arith.addf %187, %200 : vector<1x64xf32>
    %c1_32 = arith.constant 1 : index
    %c1_33 = arith.constant 1 : index
    %202 = memref.load %arg4[%c1_32, %c1_33] : memref<4x4xf32, #tpu.memory_space<smem>>
    %203 = vector.broadcast %202 : f32 to vector<1x64xf32>
    %204 = arith.mulf %203, %197 : vector<1x64xf32>
    %205 = arith.addf %190, %204 : vector<1x64xf32>
    %c2_34 = arith.constant 2 : index
    %c1_35 = arith.constant 1 : index
    %206 = memref.load %arg4[%c2_34, %c1_35] : memref<4x4xf32, #tpu.memory_space<smem>>
    %207 = vector.broadcast %206 : f32 to vector<1x64xf32>
    %208 = arith.mulf %207, %197 : vector<1x64xf32>
    %209 = arith.addf %193, %208 : vector<1x64xf32>
    %c3_36 = arith.constant 3 : index
    %c1_37 = arith.constant 1 : index
    %210 = memref.load %arg4[%c3_36, %c1_37] : memref<4x4xf32, #tpu.memory_space<smem>>
    %211 = vector.broadcast %210 : f32 to vector<1x64xf32>
    %212 = arith.mulf %211, %197 : vector<1x64xf32>
    %213 = arith.addf %196, %212 : vector<1x64xf32>
    %214 = vector.extract_strided_slice %95 {offsets = [2, 0], sizes = [1, 64], strides = [1, 1]} : vector<16x64xf32> to vector<1x64xf32>
    %c0_38 = arith.constant 0 : index
    %c2_39 = arith.constant 2 : index
    %215 = memref.load %arg4[%c0_38, %c2_39] : memref<4x4xf32, #tpu.memory_space<smem>>
    %216 = vector.broadcast %215 : f32 to vector<1x64xf32>
    %217 = arith.mulf %216, %214 : vector<1x64xf32>
    %218 = arith.addf %201, %217 : vector<1x64xf32>
    %c1_40 = arith.constant 1 : index
    %c2_41 = arith.constant 2 : index
    %219 = memref.load %arg4[%c1_40, %c2_41] : memref<4x4xf32, #tpu.memory_space<smem>>
    %220 = vector.broadcast %219 : f32 to vector<1x64xf32>
    %221 = arith.mulf %220, %214 : vector<1x64xf32>
    %222 = arith.addf %205, %221 : vector<1x64xf32>
    %c2_42 = arith.constant 2 : index
    %c2_43 = arith.constant 2 : index
    %223 = memref.load %arg4[%c2_42, %c2_43] : memref<4x4xf32, #tpu.memory_space<smem>>
    %224 = vector.broadcast %223 : f32 to vector<1x64xf32>
    %225 = arith.mulf %224, %214 : vector<1x64xf32>
    %226 = arith.addf %209, %225 : vector<1x64xf32>
    %c3_44 = arith.constant 3 : index
    %c2_45 = arith.constant 2 : index
    %227 = memref.load %arg4[%c3_44, %c2_45] : memref<4x4xf32, #tpu.memory_space<smem>>
    %228 = vector.broadcast %227 : f32 to vector<1x64xf32>
    %229 = arith.mulf %228, %214 : vector<1x64xf32>
    %230 = arith.addf %213, %229 : vector<1x64xf32>
    %231 = vector.extract_strided_slice %95 {offsets = [3, 0], sizes = [1, 64], strides = [1, 1]} : vector<16x64xf32> to vector<1x64xf32>
    %c0_46 = arith.constant 0 : index
    %c3_47 = arith.constant 3 : index
    %232 = memref.load %arg4[%c0_46, %c3_47] : memref<4x4xf32, #tpu.memory_space<smem>>
    %233 = vector.broadcast %232 : f32 to vector<1x64xf32>
    %234 = arith.mulf %233, %231 : vector<1x64xf32>
    %235 = arith.addf %218, %234 : vector<1x64xf32>
    %c1_48 = arith.constant 1 : index
    %c3_49 = arith.constant 3 : index
    %236 = memref.load %arg4[%c1_48, %c3_49] : memref<4x4xf32, #tpu.memory_space<smem>>
    %237 = vector.broadcast %236 : f32 to vector<1x64xf32>
    %238 = arith.mulf %237, %231 : vector<1x64xf32>
    %239 = arith.addf %222, %238 : vector<1x64xf32>
    %c2_50 = arith.constant 2 : index
    %c3_51 = arith.constant 3 : index
    %240 = memref.load %arg4[%c2_50, %c3_51] : memref<4x4xf32, #tpu.memory_space<smem>>
    %241 = vector.broadcast %240 : f32 to vector<1x64xf32>
    %242 = arith.mulf %241, %231 : vector<1x64xf32>
    %243 = arith.addf %226, %242 : vector<1x64xf32>
    %c3_52 = arith.constant 3 : index
    %c3_53 = arith.constant 3 : index
    %244 = memref.load %arg4[%c3_52, %c3_53] : memref<4x4xf32, #tpu.memory_space<smem>>
    %245 = vector.broadcast %244 : f32 to vector<1x64xf32>
    %246 = arith.mulf %245, %231 : vector<1x64xf32>
    %247 = arith.addf %230, %246 : vector<1x64xf32>
    %c0_54 = arith.constant 0 : index
    %248 = memref.load %arg5[%c0_54] : memref<4xf32, #tpu.memory_space<smem>>
    %249 = vector.broadcast %248 : f32 to vector<1x64xf32>
    %250 = arith.addf %235, %249 : vector<1x64xf32>
    %251 = arith.truncf %250 : vector<1x64xf32> to vector<1x64xbf16>
    %c0_55 = arith.constant 0 : index
    %c0_56 = arith.constant 0 : index
    %252 = vector.load %arg11[%c0_55, %c0_56] : memref<16x64xbf16, #tpu.memory_space<vmem>>, vector<1x64xbf16>
    tpu.vector_store %arg11[%c0_55, %c0_56], %251 {strides = array<i32>} : memref<16x64xbf16, #tpu.memory_space<vmem>>, vector<1x64xbf16>,
    %c1_57 = arith.constant 1 : index
    %253 = memref.load %arg5[%c1_57] : memref<4xf32, #tpu.memory_space<smem>>
    %254 = vector.broadcast %253 : f32 to vector<1x64xf32>
    %255 = arith.addf %239, %254 : vector<1x64xf32>
    %256 = arith.truncf %255 : vector<1x64xf32> to vector<1x64xbf16>
    %c1_58 = arith.constant 1 : index
    %c0_59 = arith.constant 0 : index
    %257 = vector.load %arg11[%c1_58, %c0_59] : memref<16x64xbf16, #tpu.memory_space<vmem>>, vector<1x64xbf16>
    tpu.vector_store %arg11[%c1_58, %c0_59], %256 {strides = array<i32>} : memref<16x64xbf16, #tpu.memory_space<vmem>>, vector<1x64xbf16>,
    %c2_60 = arith.constant 2 : index
    %258 = memref.load %arg5[%c2_60] : memref<4xf32, #tpu.memory_space<smem>>
    %259 = vector.broadcast %258 : f32 to vector<1x64xf32>
    %260 = arith.addf %243, %259 : vector<1x64xf32>
    %261 = arith.truncf %260 : vector<1x64xf32> to vector<1x64xbf16>
    %c2_61 = arith.constant 2 : index
    %c0_62 = arith.constant 0 : index
    %262 = vector.load %arg11[%c2_61, %c0_62] : memref<16x64xbf16, #tpu.memory_space<vmem>>, vector<1x64xbf16>
    tpu.vector_store %arg11[%c2_61, %c0_62], %261 {strides = array<i32>} : memref<16x64xbf16, #tpu.memory_space<vmem>>, vector<1x64xbf16>,
    %c3_63 = arith.constant 3 : index
    %263 = memref.load %arg5[%c3_63] : memref<4xf32, #tpu.memory_space<smem>>
    %264 = vector.broadcast %263 : f32 to vector<1x64xf32>
    %265 = arith.addf %247, %264 : vector<1x64xf32>
    %266 = arith.truncf %265 : vector<1x64xf32> to vector<1x64xbf16>
    %c3_64 = arith.constant 3 : index
    %c0_65 = arith.constant 0 : index
    %267 = vector.load %arg11[%c3_64, %c0_65] : memref<16x64xbf16, #tpu.memory_space<vmem>>, vector<1x64xbf16>
    tpu.vector_store %arg11[%c3_64, %c0_65], %266 {strides = array<i32>} : memref<16x64xbf16, #tpu.memory_space<vmem>>, vector<1x64xbf16>,
    %268 = vector.extract_strided_slice %95 {offsets = [4, 0], sizes = [1, 64], strides = [1, 1]} : vector<16x64xf32> to vector<1x64xf32>
    %c0_66 = arith.constant 0 : index
    %c0_67 = arith.constant 0 : index
    %269 = memref.load %arg4[%c0_66, %c0_67] : memref<4x4xf32, #tpu.memory_space<smem>>
    %270 = vector.broadcast %269 : f32 to vector<1x64xf32>
    %271 = arith.mulf %270, %268 : vector<1x64xf32>
    %c1_68 = arith.constant 1 : index
    %c0_69 = arith.constant 0 : index
    %272 = memref.load %arg4[%c1_68, %c0_69] : memref<4x4xf32, #tpu.memory_space<smem>>
    %273 = vector.broadcast %272 : f32 to vector<1x64xf32>
    %274 = arith.mulf %273, %268 : vector<1x64xf32>
    %c2_70 = arith.constant 2 : index
    %c0_71 = arith.constant 0 : index
    %275 = memref.load %arg4[%c2_70, %c0_71] : memref<4x4xf32, #tpu.memory_space<smem>>
    %276 = vector.broadcast %275 : f32 to vector<1x64xf32>
    %277 = arith.mulf %276, %268 : vector<1x64xf32>
    %c3_72 = arith.constant 3 : index
    %c0_73 = arith.constant 0 : index
    %278 = memref.load %arg4[%c3_72, %c0_73] : memref<4x4xf32, #tpu.memory_space<smem>>
    %279 = vector.broadcast %278 : f32 to vector<1x64xf32>
    %280 = arith.mulf %279, %268 : vector<1x64xf32>
    %281 = vector.extract_strided_slice %95 {offsets = [5, 0], sizes = [1, 64], strides = [1, 1]} : vector<16x64xf32> to vector<1x64xf32>
    %c0_74 = arith.constant 0 : index
    %c1_75 = arith.constant 1 : index
    %282 = memref.load %arg4[%c0_74, %c1_75] : memref<4x4xf32, #tpu.memory_space<smem>>
    %283 = vector.broadcast %282 : f32 to vector<1x64xf32>
    %284 = arith.mulf %283, %281 : vector<1x64xf32>
    %285 = arith.addf %271, %284 : vector<1x64xf32>
    %c1_76 = arith.constant 1 : index
    %c1_77 = arith.constant 1 : index
    %286 = memref.load %arg4[%c1_76, %c1_77] : memref<4x4xf32, #tpu.memory_space<smem>>
    %287 = vector.broadcast %286 : f32 to vector<1x64xf32>
    %288 = arith.mulf %287, %281 : vector<1x64xf32>
    %289 = arith.addf %274, %288 : vector<1x64xf32>
    %c2_78 = arith.constant 2 : index
    %c1_79 = arith.constant 1 : index
    %290 = memref.load %arg4[%c2_78, %c1_79] : memref<4x4xf32, #tpu.memory_space<smem>>
    %291 = vector.broadcast %290 : f32 to vector<1x64xf32>
    %292 = arith.mulf %291, %281 : vector<1x64xf32>
    %293 = arith.addf %277, %292 : vector<1x64xf32>
    %c3_80 = arith.constant 3 : index
    %c1_81 = arith.constant 1 : index
    %294 = memref.load %arg4[%c3_80, %c1_81] : memref<4x4xf32, #tpu.memory_space<smem>>
    %295 = vector.broadcast %294 : f32 to vector<1x64xf32>
    %296 = arith.mulf %295, %281 : vector<1x64xf32>
    %297 = arith.addf %280, %296 : vector<1x64xf32>
    %298 = vector.extract_strided_slice %95 {offsets = [6, 0], sizes = [1, 64], strides = [1, 1]} : vector<16x64xf32> to vector<1x64xf32>
    %c0_82 = arith.constant 0 : index
    %c2_83 = arith.constant 2 : index
    %299 = memref.load %arg4[%c0_82, %c2_83] : memref<4x4xf32, #tpu.memory_space<smem>>
    %300 = vector.broadcast %299 : f32 to vector<1x64xf32>
    %301 = arith.mulf %300, %298 : vector<1x64xf32>
    %302 = arith.addf %285, %301 : vector<1x64xf32>
    %c1_84 = arith.constant 1 : index
    %c2_85 = arith.constant 2 : index
    %303 = memref.load %arg4[%c1_84, %c2_85] : memref<4x4xf32, #tpu.memory_space<smem>>
    %304 = vector.broadcast %303 : f32 to vector<1x64xf32>
    %305 = arith.mulf %304, %298 : vector<1x64xf32>
    %306 = arith.addf %289, %305 : vector<1x64xf32>
    %c2_86 = arith.constant 2 : index
    %c2_87 = arith.constant 2 : index
    %307 = memref.load %arg4[%c2_86, %c2_87] : memref<4x4xf32, #tpu.memory_space<smem>>
    %308 = vector.broadcast %307 : f32 to vector<1x64xf32>
    %309 = arith.mulf %308, %298 : vector<1x64xf32>
    %310 = arith.addf %293, %309 : vector<1x64xf32>
    %c3_88 = arith.constant 3 : index
    %c2_89 = arith.constant 2 : index
    %311 = memref.load %arg4[%c3_88, %c2_89] : memref<4x4xf32, #tpu.memory_space<smem>>
    %312 = vector.broadcast %311 : f32 to vector<1x64xf32>
    %313 = arith.mulf %312, %298 : vector<1x64xf32>
    %314 = arith.addf %297, %313 : vector<1x64xf32>
    %315 = vector.extract_strided_slice %95 {offsets = [7, 0], sizes = [1, 64], strides = [1, 1]} : vector<16x64xf32> to vector<1x64xf32>
    %c0_90 = arith.constant 0 : index
    %c3_91 = arith.constant 3 : index
    %316 = memref.load %arg4[%c0_90, %c3_91] : memref<4x4xf32, #tpu.memory_space<smem>>
    %317 = vector.broadcast %316 : f32 to vector<1x64xf32>
    %318 = arith.mulf %317, %315 : vector<1x64xf32>
    %319 = arith.addf %302, %318 : vector<1x64xf32>
    %c1_92 = arith.constant 1 : index
    %c3_93 = arith.constant 3 : index
    %320 = memref.load %arg4[%c1_92, %c3_93] : memref<4x4xf32, #tpu.memory_space<smem>>
    %321 = vector.broadcast %320 : f32 to vector<1x64xf32>
    %322 = arith.mulf %321, %315 : vector<1x64xf32>
    %323 = arith.addf %306, %322 : vector<1x64xf32>
    %c2_94 = arith.constant 2 : index
    %c3_95 = arith.constant 3 : index
    %324 = memref.load %arg4[%c2_94, %c3_95] : memref<4x4xf32, #tpu.memory_space<smem>>
    %325 = vector.broadcast %324 : f32 to vector<1x64xf32>
    %326 = arith.mulf %325, %315 : vector<1x64xf32>
    %327 = arith.addf %310, %326 : vector<1x64xf32>
    %c3_96 = arith.constant 3 : index
    %c3_97 = arith.constant 3 : index
    %328 = memref.load %arg4[%c3_96, %c3_97] : memref<4x4xf32, #tpu.memory_space<smem>>
    %329 = vector.broadcast %328 : f32 to vector<1x64xf32>
    %330 = arith.mulf %329, %315 : vector<1x64xf32>
    %331 = arith.addf %314, %330 : vector<1x64xf32>
    %c0_98 = arith.constant 0 : index
    %332 = memref.load %arg5[%c0_98] : memref<4xf32, #tpu.memory_space<smem>>
    %333 = vector.broadcast %332 : f32 to vector<1x64xf32>
    %334 = arith.addf %319, %333 : vector<1x64xf32>
    %335 = arith.truncf %334 : vector<1x64xf32> to vector<1x64xbf16>
    %c4 = arith.constant 4 : index
    %c0_99 = arith.constant 0 : index
    %336 = vector.load %arg11[%c4, %c0_99] : memref<16x64xbf16, #tpu.memory_space<vmem>>, vector<1x64xbf16>
    tpu.vector_store %arg11[%c4, %c0_99], %335 {strides = array<i32>} : memref<16x64xbf16, #tpu.memory_space<vmem>>, vector<1x64xbf16>,
    %c1_100 = arith.constant 1 : index
    %337 = memref.load %arg5[%c1_100] : memref<4xf32, #tpu.memory_space<smem>>
    %338 = vector.broadcast %337 : f32 to vector<1x64xf32>
    %339 = arith.addf %323, %338 : vector<1x64xf32>
    %340 = arith.truncf %339 : vector<1x64xf32> to vector<1x64xbf16>
    %c5 = arith.constant 5 : index
    %c0_101 = arith.constant 0 : index
    %341 = vector.load %arg11[%c5, %c0_101] : memref<16x64xbf16, #tpu.memory_space<vmem>>, vector<1x64xbf16>
    tpu.vector_store %arg11[%c5, %c0_101], %340 {strides = array<i32>} : memref<16x64xbf16, #tpu.memory_space<vmem>>, vector<1x64xbf16>,
    %c2_102 = arith.constant 2 : index
    %342 = memref.load %arg5[%c2_102] : memref<4xf32, #tpu.memory_space<smem>>
    %343 = vector.broadcast %342 : f32 to vector<1x64xf32>
    %344 = arith.addf %327, %343 : vector<1x64xf32>
    %345 = arith.truncf %344 : vector<1x64xf32> to vector<1x64xbf16>
    %c6 = arith.constant 6 : index
    %c0_103 = arith.constant 0 : index
    %346 = vector.load %arg11[%c6, %c0_103] : memref<16x64xbf16, #tpu.memory_space<vmem>>, vector<1x64xbf16>
    tpu.vector_store %arg11[%c6, %c0_103], %345 {strides = array<i32>} : memref<16x64xbf16, #tpu.memory_space<vmem>>, vector<1x64xbf16>,
    %c3_104 = arith.constant 3 : index
    %347 = memref.load %arg5[%c3_104] : memref<4xf32, #tpu.memory_space<smem>>
    %348 = vector.broadcast %347 : f32 to vector<1x64xf32>
    %349 = arith.addf %331, %348 : vector<1x64xf32>
    %350 = arith.truncf %349 : vector<1x64xf32> to vector<1x64xbf16>
    %c7 = arith.constant 7 : index
    %c0_105 = arith.constant 0 : index
    %351 = vector.load %arg11[%c7, %c0_105] : memref<16x64xbf16, #tpu.memory_space<vmem>>, vector<1x64xbf16>
    tpu.vector_store %arg11[%c7, %c0_105], %350 {strides = array<i32>} : memref<16x64xbf16, #tpu.memory_space<vmem>>, vector<1x64xbf16>,
    %352 = vector.extract_strided_slice %95 {offsets = [8, 0], sizes = [1, 64], strides = [1, 1]} : vector<16x64xf32> to vector<1x64xf32>
    %c0_106 = arith.constant 0 : index
    %c0_107 = arith.constant 0 : index
    %353 = memref.load %arg4[%c0_106, %c0_107] : memref<4x4xf32, #tpu.memory_space<smem>>
    %354 = vector.broadcast %353 : f32 to vector<1x64xf32>
    %355 = arith.mulf %354, %352 : vector<1x64xf32>
    %c1_108 = arith.constant 1 : index
    %c0_109 = arith.constant 0 : index
    %356 = memref.load %arg4[%c1_108, %c0_109] : memref<4x4xf32, #tpu.memory_space<smem>>
    %357 = vector.broadcast %356 : f32 to vector<1x64xf32>
    %358 = arith.mulf %357, %352 : vector<1x64xf32>
    %c2_110 = arith.constant 2 : index
    %c0_111 = arith.constant 0 : index
    %359 = memref.load %arg4[%c2_110, %c0_111] : memref<4x4xf32, #tpu.memory_space<smem>>
    %360 = vector.broadcast %359 : f32 to vector<1x64xf32>
    %361 = arith.mulf %360, %352 : vector<1x64xf32>
    %c3_112 = arith.constant 3 : index
    %c0_113 = arith.constant 0 : index
    %362 = memref.load %arg4[%c3_112, %c0_113] : memref<4x4xf32, #tpu.memory_space<smem>>
    %363 = vector.broadcast %362 : f32 to vector<1x64xf32>
    %364 = arith.mulf %363, %352 : vector<1x64xf32>
    %365 = vector.extract_strided_slice %95 {offsets = [9, 0], sizes = [1, 64], strides = [1, 1]} : vector<16x64xf32> to vector<1x64xf32>
    %c0_114 = arith.constant 0 : index
    %c1_115 = arith.constant 1 : index
    %366 = memref.load %arg4[%c0_114, %c1_115] : memref<4x4xf32, #tpu.memory_space<smem>>
    %367 = vector.broadcast %366 : f32 to vector<1x64xf32>
    %368 = arith.mulf %367, %365 : vector<1x64xf32>
    %369 = arith.addf %355, %368 : vector<1x64xf32>
    %c1_116 = arith.constant 1 : index
    %c1_117 = arith.constant 1 : index
    %370 = memref.load %arg4[%c1_116, %c1_117] : memref<4x4xf32, #tpu.memory_space<smem>>
    %371 = vector.broadcast %370 : f32 to vector<1x64xf32>
    %372 = arith.mulf %371, %365 : vector<1x64xf32>
    %373 = arith.addf %358, %372 : vector<1x64xf32>
    %c2_118 = arith.constant 2 : index
    %c1_119 = arith.constant 1 : index
    %374 = memref.load %arg4[%c2_118, %c1_119] : memref<4x4xf32, #tpu.memory_space<smem>>
    %375 = vector.broadcast %374 : f32 to vector<1x64xf32>
    %376 = arith.mulf %375, %365 : vector<1x64xf32>
    %377 = arith.addf %361, %376 : vector<1x64xf32>
    %c3_120 = arith.constant 3 : index
    %c1_121 = arith.constant 1 : index
    %378 = memref.load %arg4[%c3_120, %c1_121] : memref<4x4xf32, #tpu.memory_space<smem>>
    %379 = vector.broadcast %378 : f32 to vector<1x64xf32>
    %380 = arith.mulf %379, %365 : vector<1x64xf32>
    %381 = arith.addf %364, %380 : vector<1x64xf32>
    %382 = vector.extract_strided_slice %95 {offsets = [10, 0], sizes = [1, 64], strides = [1, 1]} : vector<16x64xf32> to vector<1x64xf32>
    %c0_122 = arith.constant 0 : index
    %c2_123 = arith.constant 2 : index
    %383 = memref.load %arg4[%c0_122, %c2_123] : memref<4x4xf32, #tpu.memory_space<smem>>
    %384 = vector.broadcast %383 : f32 to vector<1x64xf32>
    %385 = arith.mulf %384, %382 : vector<1x64xf32>
    %386 = arith.addf %369, %385 : vector<1x64xf32>
    %c1_124 = arith.constant 1 : index
    %c2_125 = arith.constant 2 : index
    %387 = memref.load %arg4[%c1_124, %c2_125] : memref<4x4xf32, #tpu.memory_space<smem>>
    %388 = vector.broadcast %387 : f32 to vector<1x64xf32>
    %389 = arith.mulf %388, %382 : vector<1x64xf32>
    %390 = arith.addf %373, %389 : vector<1x64xf32>
    %c2_126 = arith.constant 2 : index
    %c2_127 = arith.constant 2 : index
    %391 = memref.load %arg4[%c2_126, %c2_127] : memref<4x4xf32, #tpu.memory_space<smem>>
    %392 = vector.broadcast %391 : f32 to vector<1x64xf32>
    %393 = arith.mulf %392, %382 : vector<1x64xf32>
    %394 = arith.addf %377, %393 : vector<1x64xf32>
    %c3_128 = arith.constant 3 : index
    %c2_129 = arith.constant 2 : index
    %395 = memref.load %arg4[%c3_128, %c2_129] : memref<4x4xf32, #tpu.memory_space<smem>>
    %396 = vector.broadcast %395 : f32 to vector<1x64xf32>
    %397 = arith.mulf %396, %382 : vector<1x64xf32>
    %398 = arith.addf %381, %397 : vector<1x64xf32>
    %399 = vector.extract_strided_slice %95 {offsets = [11, 0], sizes = [1, 64], strides = [1, 1]} : vector<16x64xf32> to vector<1x64xf32>
    %c0_130 = arith.constant 0 : index
    %c3_131 = arith.constant 3 : index
    %400 = memref.load %arg4[%c0_130, %c3_131] : memref<4x4xf32, #tpu.memory_space<smem>>
    %401 = vector.broadcast %400 : f32 to vector<1x64xf32>
    %402 = arith.mulf %401, %399 : vector<1x64xf32>
    %403 = arith.addf %386, %402 : vector<1x64xf32>
    %c1_132 = arith.constant 1 : index
    %c3_133 = arith.constant 3 : index
    %404 = memref.load %arg4[%c1_132, %c3_133] : memref<4x4xf32, #tpu.memory_space<smem>>
    %405 = vector.broadcast %404 : f32 to vector<1x64xf32>
    %406 = arith.mulf %405, %399 : vector<1x64xf32>
    %407 = arith.addf %390, %406 : vector<1x64xf32>
    %c2_134 = arith.constant 2 : index
    %c3_135 = arith.constant 3 : index
    %408 = memref.load %arg4[%c2_134, %c3_135] : memref<4x4xf32, #tpu.memory_space<smem>>
    %409 = vector.broadcast %408 : f32 to vector<1x64xf32>
    %410 = arith.mulf %409, %399 : vector<1x64xf32>
    %411 = arith.addf %394, %410 : vector<1x64xf32>
    %c3_136 = arith.constant 3 : index
    %c3_137 = arith.constant 3 : index
    %412 = memref.load %arg4[%c3_136, %c3_137] : memref<4x4xf32, #tpu.memory_space<smem>>
    %413 = vector.broadcast %412 : f32 to vector<1x64xf32>
    %414 = arith.mulf %413, %399 : vector<1x64xf32>
    %415 = arith.addf %398, %414 : vector<1x64xf32>
    %c0_138 = arith.constant 0 : index
    %416 = memref.load %arg5[%c0_138] : memref<4xf32, #tpu.memory_space<smem>>
    %417 = vector.broadcast %416 : f32 to vector<1x64xf32>
    %418 = arith.addf %403, %417 : vector<1x64xf32>
    %419 = arith.truncf %418 : vector<1x64xf32> to vector<1x64xbf16>
    %c8_139 = arith.constant 8 : index
    %c0_140 = arith.constant 0 : index
    %420 = vector.load %arg11[%c8_139, %c0_140] : memref<16x64xbf16, #tpu.memory_space<vmem>>, vector<1x64xbf16>
    tpu.vector_store %arg11[%c8_139, %c0_140], %419 {strides = array<i32>} : memref<16x64xbf16, #tpu.memory_space<vmem>>, vector<1x64xbf16>,
    %c1_141 = arith.constant 1 : index
    %421 = memref.load %arg5[%c1_141] : memref<4xf32, #tpu.memory_space<smem>>
    %422 = vector.broadcast %421 : f32 to vector<1x64xf32>
    %423 = arith.addf %407, %422 : vector<1x64xf32>
    %424 = arith.truncf %423 : vector<1x64xf32> to vector<1x64xbf16>
    %c9_142 = arith.constant 9 : index
    %c0_143 = arith.constant 0 : index
    %425 = vector.load %arg11[%c9_142, %c0_143] : memref<16x64xbf16, #tpu.memory_space<vmem>>, vector<1x64xbf16>
    tpu.vector_store %arg11[%c9_142, %c0_143], %424 {strides = array<i32>} : memref<16x64xbf16, #tpu.memory_space<vmem>>, vector<1x64xbf16>,
    %c2_144 = arith.constant 2 : index
    %426 = memref.load %arg5[%c2_144] : memref<4xf32, #tpu.memory_space<smem>>
    %427 = vector.broadcast %426 : f32 to vector<1x64xf32>
    %428 = arith.addf %411, %427 : vector<1x64xf32>
    %429 = arith.truncf %428 : vector<1x64xf32> to vector<1x64xbf16>
    %c10_145 = arith.constant 10 : index
    %c0_146 = arith.constant 0 : index
    %430 = vector.load %arg11[%c10_145, %c0_146] : memref<16x64xbf16, #tpu.memory_space<vmem>>, vector<1x64xbf16>
    tpu.vector_store %arg11[%c10_145, %c0_146], %429 {strides = array<i32>} : memref<16x64xbf16, #tpu.memory_space<vmem>>, vector<1x64xbf16>,
    %c3_147 = arith.constant 3 : index
    %431 = memref.load %arg5[%c3_147] : memref<4xf32, #tpu.memory_space<smem>>
    %432 = vector.broadcast %431 : f32 to vector<1x64xf32>
    %433 = arith.addf %415, %432 : vector<1x64xf32>
    %434 = arith.truncf %433 : vector<1x64xf32> to vector<1x64xbf16>
    %c11_148 = arith.constant 11 : index
    %c0_149 = arith.constant 0 : index
    %435 = vector.load %arg11[%c11_148, %c0_149] : memref<16x64xbf16, #tpu.memory_space<vmem>>, vector<1x64xbf16>
    tpu.vector_store %arg11[%c11_148, %c0_149], %434 {strides = array<i32>} : memref<16x64xbf16, #tpu.memory_space<vmem>>, vector<1x64xbf16>,
    %436 = vector.extract_strided_slice %95 {offsets = [12, 0], sizes = [1, 64], strides = [1, 1]} : vector<16x64xf32> to vector<1x64xf32>
    %c0_150 = arith.constant 0 : index
    %c0_151 = arith.constant 0 : index
    %437 = memref.load %arg4[%c0_150, %c0_151] : memref<4x4xf32, #tpu.memory_space<smem>>
    %438 = vector.broadcast %437 : f32 to vector<1x64xf32>
    %439 = arith.mulf %438, %436 : vector<1x64xf32>
    %c1_152 = arith.constant 1 : index
    %c0_153 = arith.constant 0 : index
    %440 = memref.load %arg4[%c1_152, %c0_153] : memref<4x4xf32, #tpu.memory_space<smem>>
    %441 = vector.broadcast %440 : f32 to vector<1x64xf32>
    %442 = arith.mulf %441, %436 : vector<1x64xf32>
    %c2_154 = arith.constant 2 : index
    %c0_155 = arith.constant 0 : index
    %443 = memref.load %arg4[%c2_154, %c0_155] : memref<4x4xf32, #tpu.memory_space<smem>>
    %444 = vector.broadcast %443 : f32 to vector<1x64xf32>
    %445 = arith.mulf %444, %436 : vector<1x64xf32>
    %c3_156 = arith.constant 3 : index
    %c0_157 = arith.constant 0 : index
    %446 = memref.load %arg4[%c3_156, %c0_157] : memref<4x4xf32, #tpu.memory_space<smem>>
    %447 = vector.broadcast %446 : f32 to vector<1x64xf32>
    %448 = arith.mulf %447, %436 : vector<1x64xf32>
    %449 = vector.extract_strided_slice %95 {offsets = [13, 0], sizes = [1, 64], strides = [1, 1]} : vector<16x64xf32> to vector<1x64xf32>
    %c0_158 = arith.constant 0 : index
    %c1_159 = arith.constant 1 : index
    %450 = memref.load %arg4[%c0_158, %c1_159] : memref<4x4xf32, #tpu.memory_space<smem>>
    %451 = vector.broadcast %450 : f32 to vector<1x64xf32>
    %452 = arith.mulf %451, %449 : vector<1x64xf32>
    %453 = arith.addf %439, %452 : vector<1x64xf32>
    %c1_160 = arith.constant 1 : index
    %c1_161 = arith.constant 1 : index
    %454 = memref.load %arg4[%c1_160, %c1_161] : memref<4x4xf32, #tpu.memory_space<smem>>
    %455 = vector.broadcast %454 : f32 to vector<1x64xf32>
    %456 = arith.mulf %455, %449 : vector<1x64xf32>
    %457 = arith.addf %442, %456 : vector<1x64xf32>
    %c2_162 = arith.constant 2 : index
    %c1_163 = arith.constant 1 : index
    %458 = memref.load %arg4[%c2_162, %c1_163] : memref<4x4xf32, #tpu.memory_space<smem>>
    %459 = vector.broadcast %458 : f32 to vector<1x64xf32>
    %460 = arith.mulf %459, %449 : vector<1x64xf32>
    %461 = arith.addf %445, %460 : vector<1x64xf32>
    %c3_164 = arith.constant 3 : index
    %c1_165 = arith.constant 1 : index
    %462 = memref.load %arg4[%c3_164, %c1_165] : memref<4x4xf32, #tpu.memory_space<smem>>
    %463 = vector.broadcast %462 : f32 to vector<1x64xf32>
    %464 = arith.mulf %463, %449 : vector<1x64xf32>
    %465 = arith.addf %448, %464 : vector<1x64xf32>
    %466 = vector.extract_strided_slice %95 {offsets = [14, 0], sizes = [1, 64], strides = [1, 1]} : vector<16x64xf32> to vector<1x64xf32>
    %c0_166 = arith.constant 0 : index
    %c2_167 = arith.constant 2 : index
    %467 = memref.load %arg4[%c0_166, %c2_167] : memref<4x4xf32, #tpu.memory_space<smem>>
    %468 = vector.broadcast %467 : f32 to vector<1x64xf32>
    %469 = arith.mulf %468, %466 : vector<1x64xf32>
    %470 = arith.addf %453, %469 : vector<1x64xf32>
    %c1_168 = arith.constant 1 : index
    %c2_169 = arith.constant 2 : index
    %471 = memref.load %arg4[%c1_168, %c2_169] : memref<4x4xf32, #tpu.memory_space<smem>>
    %472 = vector.broadcast %471 : f32 to vector<1x64xf32>
    %473 = arith.mulf %472, %466 : vector<1x64xf32>
    %474 = arith.addf %457, %473 : vector<1x64xf32>
    %c2_170 = arith.constant 2 : index
    %c2_171 = arith.constant 2 : index
    %475 = memref.load %arg4[%c2_170, %c2_171] : memref<4x4xf32, #tpu.memory_space<smem>>
    %476 = vector.broadcast %475 : f32 to vector<1x64xf32>
    %477 = arith.mulf %476, %466 : vector<1x64xf32>
    %478 = arith.addf %461, %477 : vector<1x64xf32>
    %c3_172 = arith.constant 3 : index
    %c2_173 = arith.constant 2 : index
    %479 = memref.load %arg4[%c3_172, %c2_173] : memref<4x4xf32, #tpu.memory_space<smem>>
    %480 = vector.broadcast %479 : f32 to vector<1x64xf32>
    %481 = arith.mulf %480, %466 : vector<1x64xf32>
    %482 = arith.addf %465, %481 : vector<1x64xf32>
    %483 = vector.extract_strided_slice %95 {offsets = [15, 0], sizes = [1, 64], strides = [1, 1]} : vector<16x64xf32> to vector<1x64xf32>
    %c0_174 = arith.constant 0 : index
    %c3_175 = arith.constant 3 : index
    %484 = memref.load %arg4[%c0_174, %c3_175] : memref<4x4xf32, #tpu.memory_space<smem>>
    %485 = vector.broadcast %484 : f32 to vector<1x64xf32>
    %486 = arith.mulf %485, %483 : vector<1x64xf32>
    %487 = arith.addf %470, %486 : vector<1x64xf32>
    %c1_176 = arith.constant 1 : index
    %c3_177 = arith.constant 3 : index
    %488 = memref.load %arg4[%c1_176, %c3_177] : memref<4x4xf32, #tpu.memory_space<smem>>
    %489 = vector.broadcast %488 : f32 to vector<1x64xf32>
    %490 = arith.mulf %489, %483 : vector<1x64xf32>
    %491 = arith.addf %474, %490 : vector<1x64xf32>
    %c2_178 = arith.constant 2 : index
    %c3_179 = arith.constant 3 : index
    %492 = memref.load %arg4[%c2_178, %c3_179] : memref<4x4xf32, #tpu.memory_space<smem>>
    %493 = vector.broadcast %492 : f32 to vector<1x64xf32>
    %494 = arith.mulf %493, %483 : vector<1x64xf32>
    %495 = arith.addf %478, %494 : vector<1x64xf32>
    %c3_180 = arith.constant 3 : index
    %c3_181 = arith.constant 3 : index
    %496 = memref.load %arg4[%c3_180, %c3_181] : memref<4x4xf32, #tpu.memory_space<smem>>
    %497 = vector.broadcast %496 : f32 to vector<1x64xf32>
    %498 = arith.mulf %497, %483 : vector<1x64xf32>
    %499 = arith.addf %482, %498 : vector<1x64xf32>
    %c0_182 = arith.constant 0 : index
    %500 = memref.load %arg5[%c0_182] : memref<4xf32, #tpu.memory_space<smem>>
    %501 = vector.broadcast %500 : f32 to vector<1x64xf32>
    %502 = arith.addf %487, %501 : vector<1x64xf32>
    %503 = arith.truncf %502 : vector<1x64xf32> to vector<1x64xbf16>
    %c12 = arith.constant 12 : index
    %c0_183 = arith.constant 0 : index
    %504 = vector.load %arg11[%c12, %c0_183] : memref<16x64xbf16, #tpu.memory_space<vmem>>, vector<1x64xbf16>
    tpu.vector_store %arg11[%c12, %c0_183], %503 {strides = array<i32>} : memref<16x64xbf16, #tpu.memory_space<vmem>>, vector<1x64xbf16>,
    %c1_184 = arith.constant 1 : index
    %505 = memref.load %arg5[%c1_184] : memref<4xf32, #tpu.memory_space<smem>>
    %506 = vector.broadcast %505 : f32 to vector<1x64xf32>
    %507 = arith.addf %491, %506 : vector<1x64xf32>
    %508 = arith.truncf %507 : vector<1x64xf32> to vector<1x64xbf16>
    %c13 = arith.constant 13 : index
    %c0_185 = arith.constant 0 : index
    %509 = vector.load %arg11[%c13, %c0_185] : memref<16x64xbf16, #tpu.memory_space<vmem>>, vector<1x64xbf16>
    tpu.vector_store %arg11[%c13, %c0_185], %508 {strides = array<i32>} : memref<16x64xbf16, #tpu.memory_space<vmem>>, vector<1x64xbf16>,
    %c2_186 = arith.constant 2 : index
    %510 = memref.load %arg5[%c2_186] : memref<4xf32, #tpu.memory_space<smem>>
    %511 = vector.broadcast %510 : f32 to vector<1x64xf32>
    %512 = arith.addf %495, %511 : vector<1x64xf32>
    %513 = arith.truncf %512 : vector<1x64xf32> to vector<1x64xbf16>
    %c14 = arith.constant 14 : index
    %c0_187 = arith.constant 0 : index
    %514 = vector.load %arg11[%c14, %c0_187] : memref<16x64xbf16, #tpu.memory_space<vmem>>, vector<1x64xbf16>
    tpu.vector_store %arg11[%c14, %c0_187], %513 {strides = array<i32>} : memref<16x64xbf16, #tpu.memory_space<vmem>>, vector<1x64xbf16>,
    %c3_188 = arith.constant 3 : index
    %515 = memref.load %arg5[%c3_188] : memref<4xf32, #tpu.memory_space<smem>>
    %516 = vector.broadcast %515 : f32 to vector<1x64xf32>
    %517 = arith.addf %499, %516 : vector<1x64xf32>
    %518 = arith.truncf %517 : vector<1x64xf32> to vector<1x64xbf16>
    %c15 = arith.constant 15 : index
    %c0_189 = arith.constant 0 : index
    %519 = vector.load %arg11[%c15, %c0_189] : memref<16x64xbf16, #tpu.memory_space<vmem>>, vector<1x64xbf16>
    tpu.vector_store %arg11[%c15, %c0_189], %518 {strides = array<i32>} : memref<16x64xbf16, #tpu.memory_space<vmem>>, vector<1x64xbf16>,
    %c0_190 = arith.constant 0 : index
    %c0_191 = arith.constant 0 : index
    %520 = vector.load %arg12[%c0_190, %c0_191] : memref<16x32xf32, #tpu.memory_space<vmem>>, vector<16x32xf32>
    %521 = arith.truncf %520 : vector<16x32xf32> to vector<16x32xbf16>
    %c0_192 = arith.constant 0 : index
    %c0_193 = arith.constant 0 : index
    %522 = vector.load %arg6[%c0_192, %c0_193] : memref<32x64xbf16, #tpu.memory_space<vmem>>, vector<32x64xbf16>
    %cst_194 = arith.constant dense<0.000000e+00> : vector<16x64xf32>
    %523 = tpu.matmul %521, %522, %cst_194 {dimension_numbers = #tpu.dot_dimension_numbers<[1], [0], [0], [1], [0, 0, 1, 1], [], []>} : vector<16x32xbf16>, vector<32x64xbf16>, vector<16x64xf32> -> vector<16x64xf32>
    %c0_195 = arith.constant 0 : index
    %c0_196 = arith.constant 0 : index
    %524 = vector.load %arg7[%c0_195, %c0_196] : memref<1x64xf32, #tpu.memory_space<vmem>>, vector<1x64xf32>
    %525 = vector.broadcast %524 : vector<1x64xf32> to vector<16x64xf32>
    %526 = arith.addf %523, %525 : vector<16x64xf32>
    %527 = arith.mulf %526, %526 : vector<16x64xf32>
    %528 = arith.mulf %526, %527 : vector<16x64xf32>
    %cst_197 = arith.constant 4.471500e-02 : f32
    %529 = vector.broadcast %cst_197 : f32 to vector<16x64xf32>
    %530 = arith.mulf %529, %528 : vector<16x64xf32>
    %531 = arith.addf %526, %530 : vector<16x64xf32>
    %cst_198 = arith.constant 0.797884583 : f32
    %532 = vector.broadcast %cst_198 : f32 to vector<16x64xf32>
    %533 = arith.mulf %532, %531 : vector<16x64xf32>
    %534 = math.tanh %533 : vector<16x64xf32>
    %cst_199 = arith.constant 1.000000e+00 : f32
    %535 = vector.broadcast %cst_199 : f32 to vector<16x64xf32>
    %536 = arith.addf %535, %534 : vector<16x64xf32>
    %cst_200 = arith.constant 5.000000e-01 : f32
    %537 = vector.broadcast %cst_200 : f32 to vector<16x64xf32>
    %538 = arith.mulf %537, %536 : vector<16x64xf32>
    %539 = arith.mulf %526, %538 : vector<16x64xf32>
    %540 = arith.truncf %539 : vector<16x64xf32> to vector<16x64xbf16>
    %c0_201 = arith.constant 0 : index
    %c0_202 = arith.constant 0 : index
    %541 = vector.load %arg8[%c0_201, %c0_202] : memref<64x16xbf16, #tpu.memory_space<vmem>>, vector<64x16xbf16>
    %cst_203 = arith.constant dense<0.000000e+00> : vector<16x16xf32>
    %542 = tpu.matmul %540, %541, %cst_203 {dimension_numbers = #tpu.dot_dimension_numbers<[1], [0], [0], [1], [0, 0, 1, 1], [], []>} : vector<16x64xbf16>, vector<64x16xbf16>, vector<16x16xf32> -> vector<16x16xf32>
    %c0_204 = arith.constant 0 : index
    %c0_205 = arith.constant 0 : index
    %543 = vector.load %arg9[%c0_204, %c0_205] : memref<1x16xf32, #tpu.memory_space<vmem>>, vector<1x16xf32>
    %544 = vector.broadcast %543 : vector<1x16xf32> to vector<16x16xf32>
    %545 = arith.addf %542, %544 : vector<16x16xf32>
    %546 = vector.extract_strided_slice %545 {offsets = [0, 0], sizes = [4, 16], strides = [1, 1]} : vector<16x16xf32> to vector<4x16xf32>
    %c0_206 = arith.constant 0 : index
    %c0_207 = arith.constant 0 : index
    %547 = vector.load %arg10[%c0_206, %c0_207] : memref<8x16xf32, #tpu.memory_space<vmem>>, vector<4x16xf32>
    tpu.vector_store %arg10[%c0_206, %c0_207], %546 {strides = array<i32>} : memref<8x16xf32, #tpu.memory_space<vmem>>, vector<4x16xf32>,
    %548 = vector.extract_strided_slice %545 {offsets = [8, 0], sizes = [4, 16], strides = [1, 1]} : vector<16x16xf32> to vector<4x16xf32>
    %c4_208 = arith.constant 4 : index
    %c0_209 = arith.constant 0 : index
    %549 = vector.load %arg10[%c4_208, %c0_209] : memref<8x16xf32, #tpu.memory_space<vmem>>, vector<4x16xf32>
    tpu.vector_store %arg10[%c4_208, %c0_209], %548 {strides = array<i32>} : memref<8x16xf32, #tpu.memory_space<vmem>>, vector<4x16xf32>,
    return
  }
}

</mosaic_0001>

<llo_original>
// kernel: tpu_custom_call.1
$region0: #{tpu_custom_call.1}
  #allocation0 [shape = 'u32[]', space=smem, size = 0x4, offset = 0x4, fixed_abs, tag = 'smem constant byte address 0x4 - core index']
  #allocation1 [shape = 'u32[144,128]{1,0:T(1,128)}', space=vmem, size = 0x12000, scoped, tag = 'internal scratch']
  #allocation2 [shape = 'f32[16,32]{1,0:T(8,128)}', space=vmem, size = 0x2000, scoped, tag = 'scratch operand']
  %s0 = inlined_call_operand.vmem [shape: bf16[16,256], index: 0, kind: input, shape index: {}]
  %s1 = inlined_call_operand.vmem [shape: bf16[16,64], index: 1, kind: input, shape index: {}]
  %s2 = inlined_call_operand.vmem [shape: f32[4,32], index: 2, kind: input, shape index: {}]
  %s3 = inlined_call_operand.vmem [shape: f32[1,32], index: 3, kind: input, shape index: {}]
  %s4 = inlined_call_operand.hbm [shape: f32[4,4], index: 4, kind: input, shape index: {}]
  %s5 = inlined_call_operand.vmem [shape: f32[4], index: 5, kind: input, shape index: {}]
  %s6 = inlined_call_operand.vmem [shape: bf16[32,64], index: 6, kind: input, shape index: {}]
  %s7 = inlined_call_operand.vmem [shape: f32[1,64], index: 7, kind: input, shape index: {}]
  %s8 = inlined_call_operand.vmem [shape: bf16[64,16], index: 8, kind: input, shape index: {}]
  %s9 = inlined_call_operand.vmem [shape: f32[1,16], index: 9, kind: input, shape index: {}]
  %s10 = inlined_call_operand.hbm [shape: f32[8,16], index: 10, kind: output, shape index: {0}]
  %s11 = inlined_call_operand.hbm [shape: bf16[16,64], index: 11, kind: output, shape index: {1}]
  %12 = xla_tuple %s10, %s11
  %s13 = sld [smem:[#allocation0]]
  $region66: #{tpu_custom_call.1} parent=0
    _
  %s15 = ssub.s32 1, %s13
  %s16 = scalar_select 0, %s15, %s13
  $region1: #{tpu_custom_call.1} parent=0
    #allocation3 [shape = 'u8[2048]{0}', space=smem, size = 0x800, scoped, tag = 'input window, operand 4, single buffered']
    #allocation4 [shape = 's32[1]{0}', space=sflag, size = 0x4, scoped, tag = 'scoped memory for tpu_custom_call.1']
    #allocation5 [shape = 's32[1]{0}', space=sflag, size = 0x4, scoped, tag = 'scoped memory for tpu_custom_call.1']
    #allocation6 [shape = 's32[1]{0}', space=sflag, size = 0x4, scoped, tag = 'scoped memory for tpu_custom_call.1']
    #allocation7 [shape = 'u8[512]{0}', space=smem, size = 0x200, scoped, tag = 'input window, operand 5, single buffered']
    #allocation8 [shape = 'u8[4096]{0}', space=vmem, size = 0x1000, scoped, tag = 'output window, operand 0, single buffered']
    #allocation9 [shape = 'u8[4096]{0}', space=vmem, size = 0x1000, scoped, tag = 'output window, operand 1, single buffered']
    #allocation10 [shape = 's32[1]{0}', space=sflag, size = 0x4, scoped, tag = 'scoped memory for tpu_custom_call.1']
    %17 = vsyncpa [#allocation5], 0
    %18 = vsyncpa [#allocation6], 0
    %19 = vsyncpa [#allocation4], 0
    %20 = vsyncpa [#allocation10], 0
    // Predicated region
    $region2: #{tpu_custom_call.1} parent=1 // pred_check
      _
    $region3: #{tpu_custom_call.1} parent=1 // pred_check_branch
      %22 = sbr.rel (0) target = $region5
    $region4: #{tpu_custom_call.1} parent=1 // pred_region
      _
    $region5: #{tpu_custom_call.1} parent=1 // pred_fallthru
      _
    // Predicated region
    $region6: #{tpu_custom_call.1} parent=1 // pred_check
      _
    $region7: #{tpu_custom_call.1} parent=1 // pred_check_branch
      %24 = sbr.rel (0) target = $region9
    $region8: #{tpu_custom_call.1} parent=1 // pred_region
      _
    $region9: #{tpu_custom_call.1} parent=1 // pred_fallthru
      _
    // Predicated region
    $region10: #{tpu_custom_call.1} parent=1 // pred_check
      _
    $region11: #{tpu_custom_call.1} parent=1 // pred_check_branch
      %26 = sbr.rel (0) target = $region13
    $region12: #{tpu_custom_call.1} parent=1 // pred_region
      _
    $region13: #{tpu_custom_call.1} parent=1 // pred_fallthru
      _
    // Predicated region
    $region14: #{tpu_custom_call.1} parent=1 // pred_check
      _
    $region15: #{tpu_custom_call.1} parent=1 // pred_check_branch
      %28 = sbr.rel (0) target = $region17
    $region16: #{tpu_custom_call.1} parent=1 // pred_region
      _
    $region17: #{tpu_custom_call.1} parent=1 // pred_fallthru
      _
    // Predicated region
    $region18: #{tpu_custom_call.1} parent=1 // pred_check
      _
    $region19: #{tpu_custom_call.1} parent=1 // pred_check_branch
      %30 = sbr.rel (0) target = $region21
    $region20: #{tpu_custom_call.1} parent=1 // pred_region
      %s32 = ssub.s32 64, 64
      %33 = vsyncadd [#allocation5], %s32
      %36 = dma.hbm_to_smem %s4, 64, [#allocation3], [#allocation5]
    $region21: #{tpu_custom_call.1} parent=1 // pred_fallthru
      _
    // Predicated region
    $region22: #{tpu_custom_call.1} parent=1 // pred_check
      _
    $region23: #{tpu_custom_call.1} parent=1 // pred_check_branch
      %38 = sbr.rel (0) target = $region25
    $region24: #{tpu_custom_call.1} parent=1 // pred_region
      %s40 = ssub.s32 16, 16
      %41 = vsyncadd [#allocation6], %s40
      %s43 = sshll.u32 %s5, 4
      %s44 = int_to_ptr.vmem [resolvable:$true] %s43
      %46 = dma.vmem_to_smem %s44, 16, [#allocation7], [#allocation6]
    $region25: #{tpu_custom_call.1} parent=1 // pred_fallthru
      _
    // Predicated region
    $region26: #{tpu_custom_call.1} parent=1 // pred_check
      _
    $region27: #{tpu_custom_call.1} parent=1 // pred_check_branch
      %48 = sbr.rel (0) target = $region29
    $region28: #{tpu_custom_call.1} parent=1 // pred_region
      _
    $region29: #{tpu_custom_call.1} parent=1 // pred_fallthru
      _
    // Predicated region
    $region30: #{tpu_custom_call.1} parent=1 // pred_check
      _
    $region31: #{tpu_custom_call.1} parent=1 // pred_check_branch
      %50 = sbr.rel (0) target = $region33
    $region32: #{tpu_custom_call.1} parent=1 // pred_region
      _
    $region33: #{tpu_custom_call.1} parent=1 // pred_fallthru
      _
    // Predicated region
    $region34: #{tpu_custom_call.1} parent=1 // pred_check
      _
    $region35: #{tpu_custom_call.1} parent=1 // pred_check_branch
      %52 = sbr.rel (0) target = $region37
    $region36: #{tpu_custom_call.1} parent=1 // pred_region
      _
    $region37: #{tpu_custom_call.1} parent=1 // pred_fallthru
      _
    // Predicated region
    $region38: #{tpu_custom_call.1} parent=1 // pred_check
      _
    $region39: #{tpu_custom_call.1} parent=1 // pred_check_branch
      %54 = sbr.rel (0) target = $region41
    $region40: #{tpu_custom_call.1} parent=1 // pred_region
      _
    $region41: #{tpu_custom_call.1} parent=1 // pred_fallthru
      _
    // Predicated region
    $region42: #{tpu_custom_call.1} parent=1 // pred_check
      _
    $region43: #{tpu_custom_call.1} parent=1 // pred_check_branch
      %56 = sbr.rel (0) target = $region45
    $region44: #{tpu_custom_call.1} parent=1 // pred_region
      %57 = dma.done [#allocation5], 64
    $region45: #{tpu_custom_call.1} parent=1 // pred_fallthru
      _
    // Predicated region
    $region46: #{tpu_custom_call.1} parent=1 // pred_check
      _
    $region47: #{tpu_custom_call.1} parent=1 // pred_check_branch
      %59 = sbr.rel (0) target = $region49
    $region48: #{tpu_custom_call.1} parent=1 // pred_region
      %60 = dma.done [#allocation6], 16
    $region49: #{tpu_custom_call.1} parent=1 // pred_fallthru
      _
    %61 = sfence
    %vm63 = vcmask 261120
    %64 = vst.msk [vmem:[#allocation2] sm:$0xff] %vm63, 0.0
    %65 = vst.msk [vmem:[#allocation2 + $0x8] sm:$0xff] %vm63, 0.0
    %v66 = vld [vmem:[%s2] sm:$0xf]
    %v67 = vld [vmem:[%s3] sm:$0x1]
    %v68 = vld [vmem:[%s0] sm:$0xff]
    %v69 = vld [vmem:[%s0 + $0x8] sm:$0xff]
    %v70 = vunpack.c.l.bf16 %v68
    %v71 = vunpack.c.h.bf16 %v68
    %v72 = vunpack.c.l.bf16 %v69
    %v73 = vunpack.c.h.bf16 %v69
    %v74 = vadd.f32 %v70, %v71
    %75 = vadd.xlane.f32.xlu0 %v74
    %v76 = vpop.xlane.xlu0 %75
    %v77 = vadd.f32 %v72, %v73
    %78 = vadd.xlane.f32.xlu0 %v77
    %v79 = vpop.xlane.xlu0 %78
    %v80 = vmul.f32 %v76, 0.00390625
    %v81 = vmul.f32 %v79, 0.00390625
    %v82 = vmul.f32 %v80, %v66
    %v83 = vadd.f32 %v67, %v82
    %v86 = vunpack.c.l.s4 1966171168
    %v87 = vunpack.c.0.s8 %v86
    %v88 = vlaneseq
    %v89 = vshrl.u32 %v88, 7
    %v90 = vsub.s32 %v87, %v89
    %v91 = vrot.slane %v82, %v90
    %v92 = vcombine.high %v91, %v91
    %v94 = vunpack.c.l.s4 1966171168
    %v95 = vunpack.c.0.s8 %v94
    %v96 = vlaneseq
    %v97 = vshrl.u32 %v96, 7
    %v98 = vsub.s32 %v95, %v97
    %v99 = vrot.slane %v91, %v98
    %v101 = vunpack.c.l.s4 1966171168
    %v102 = vunpack.c.0.s8 %v101
    %v103 = vlaneseq
    %v104 = vshrl.u32 %v103, 7
    %v105 = vsub.s32 %v102, %v104
    %v106 = vrot.slane %v92, %v105
    %v108 = vadd.f32 %v83, %v106
    %v109 = vcombine.high %v99, %v99
    %v111 = vadd.f32 %v108, %v109
    %v112 = vcombine.high %v106, %v106
    %v114 = vadd.f32 %v111, %v112
    %vm115 = vcmask 253952
    %116 = vst.msk [vmem:[#allocation2] sm:$0x1] %vm115, %v114
    %v118 = vrot.slane %v66, 4
    %v120 = vmul.f32 %v80, %v118
    %v122 = vcombine.high %v120, %v120
    %v124 = vunpack.c.l.s4 1966171168
    %v125 = vunpack.c.0.s8 %v124
    %v126 = vlaneseq
    %v127 = vshrl.u32 %v126, 7
    %v128 = vsub.s32 %v125, %v127
    %v129 = vrot.slane %v122, %v128
    %v131 = vunpack.c.l.s4 1966171168
    %v132 = vunpack.c.0.s8 %v131
    %v133 = vlaneseq
    %v134 = vshrl.u32 %v133, 7
    %v135 = vsub.s32 %v132, %v134
    %v136 = vrot.slane %v129, %v135
    %v138 = vadd.f32 %v67, %v136
    %v139 = vcombine.high %v129, %v129
    %v141 = vunpack.c.l.s4 1966171168
    %v142 = vunpack.c.0.s8 %v141
    %v143 = vlaneseq
    %v144 = vshrl.u32 %v143, 7
    %v145 = vsub.s32 %v142, %v144
    %v146 = vrot.slane %v139, %v145
    %v148 = vadd.f32 %v138, %v146
    %v149 = vcombine.high %v136, %v136
    %v151 = vadd.f32 %v148, %v149
    %v152 = vcombine.high %v146, %v146
    %v154 = vadd.f32 %v151, %v152
    %155 = vst.msk [vmem:[#allocation2 + $0x1] sm:$0x1] %vm115, %v154
    %v156 = vmul.f32 %v81, %v66
    %v157 = vadd.f32 %v67, %v156
    %v160 = vunpack.c.l.s4 1966171168
    %v161 = vunpack.c.0.s8 %v160
    %v162 = vlaneseq
    %v163 = vshrl.u32 %v162, 7
    %v164 = vsub.s32 %v161, %v163
    %v165 = vrot.slane %v156, %v164
    %v166 = vcombine.high %v165, %v165
    %v168 = vunpack.c.l.s4 1966171168
    %v169 = vunpack.c.0.s8 %v168
    %v170 = vlaneseq
    %v171 = vshrl.u32 %v170, 7
    %v172 = vsub.s32 %v169, %v171
    %v173 = vrot.slane %v165, %v172
    %v175 = vunpack.c.l.s4 1966171168
    %v176 = vunpack.c.0.s8 %v175
    %v177 = vlaneseq
    %v178 = vshrl.u32 %v177, 7
    %v179 = vsub.s32 %v176, %v178
    %v180 = vrot.slane %v166, %v179
    %v182 = vadd.f32 %v157, %v180
    %v183 = vcombine.high %v173, %v173
    %v185 = vadd.f32 %v182, %v183
    %v186 = vcombine.high %v180, %v180
    %v188 = vadd.f32 %v185, %v186
    %189 = vst.msk [vmem:[#allocation2 + $0x2] sm:$0x1] %vm115, %v188
    %v190 = vmul.f32 %v81, %v118
    %v192 = vcombine.high %v190, %v190
    %v194 = vunpack.c.l.s4 1966171168
    %v195 = vunpack.c.0.s8 %v194
    %v196 = vlaneseq
    %v197 = vshrl.u32 %v196, 7
    %v198 = vsub.s32 %v195, %v197
    %v199 = vrot.slane %v192, %v198
    %v201 = vunpack.c.l.s4 1966171168
    %v202 = vunpack.c.0.s8 %v201
    %v203 = vlaneseq
    %v204 = vshrl.u32 %v203, 7
    %v205 = vsub.s32 %v202, %v204
    %v206 = vrot.slane %v199, %v205
    %v208 = vadd.f32 %v67, %v206
    %v209 = vcombine.high %v199, %v199
    %v211 = vunpack.c.l.s4 1966171168
    %v212 = vunpack.c.0.s8 %v211
    %v213 = vlaneseq
    %v214 = vshrl.u32 %v213, 7
    %v215 = vsub.s32 %v212, %v214
    %v216 = vrot.slane %v209, %v215
    %v218 = vadd.f32 %v208, %v216
    %v219 = vcombine.high %v206, %v206
    %v221 = vadd.f32 %v218, %v219
    %v222 = vcombine.high %v216, %v216
    %v224 = vadd.f32 %v221, %v222
    %225 = vst.msk [vmem:[#allocation2 + $0x3] sm:$0x1] %vm115, %v224
    %v226 = vld [vmem:[%s1] sm:$0xf]
    %v227 = vld [vmem:[%s1 + $0x4] sm:$0xf]
    %v228 = vunpack.c.l.bf16 %v226
    %v229 = vunpack.c.l.bf16 %v227
    %vm230 = vcmask 523264
    %v231 = vsel %vm230, %v228, 0.0
    %232 = vadd.xlane.f32.xlu0 %v231
    %v233 = vpop.xlane.xlu0 %232
    %v234 = vsel %vm230, %v229, 0.0
    %235 = vadd.xlane.f32.xlu0 %v234
    %v236 = vpop.xlane.xlu0 %235
    %v237 = vmul.f32 %v233, 0.015625
    %v238 = vmul.f32 %v236, 0.015625
    %v239 = vmul.f32 %v237, %v66
    %v240 = vadd.f32 %v67, %v239
    %v243 = vunpack.c.l.s4 1966171168
    %v244 = vunpack.c.0.s8 %v243
    %v245 = vlaneseq
    %v246 = vshrl.u32 %v245, 7
    %v247 = vsub.s32 %v244, %v246
    %v248 = vrot.slane %v239, %v247
    %v249 = vcombine.high %v248, %v248
    %v251 = vunpack.c.l.s4 1966171168
    %v252 = vunpack.c.0.s8 %v251
    %v253 = vlaneseq
    %v254 = vshrl.u32 %v253, 7
    %v255 = vsub.s32 %v252, %v254
    %v256 = vrot.slane %v248, %v255
    %v258 = vunpack.c.l.s4 1966171168
    %v259 = vunpack.c.0.s8 %v258
    %v260 = vlaneseq
    %v261 = vshrl.u32 %v260, 7
    %v262 = vsub.s32 %v259, %v261
    %v263 = vrot.slane %v249, %v262
    %v265 = vadd.f32 %v240, %v263
    %v266 = vcombine.high %v256, %v256
    %v268 = vadd.f32 %v265, %v266
    %v269 = vcombine.high %v263, %v263
    %v271 = vadd.f32 %v268, %v269
    %272 = vst.msk [vmem:[#allocation2 + $0x8] sm:$0x1] %vm115, %v271
    %v273 = vmul.f32 %v237, %v118
    %v275 = vcombine.high %v273, %v273
    %v277 = vunpack.c.l.s4 1966171168
    %v278 = vunpack.c.0.s8 %v277
    %v279 = vlaneseq
    %v280 = vshrl.u32 %v279, 7
    %v281 = vsub.s32 %v278, %v280
    %v282 = vrot.slane %v275, %v281
    %v284 = vunpack.c.l.s4 1966171168
    %v285 = vunpack.c.0.s8 %v284
    %v286 = vlaneseq
    %v287 = vshrl.u32 %v286, 7
    %v288 = vsub.s32 %v285, %v287
    %v289 = vrot.slane %v282, %v288
    %v291 = vadd.f32 %v67, %v289
    %v292 = vcombine.high %v282, %v282
    %v294 = vunpack.c.l.s4 1966171168
    %v295 = vunpack.c.0.s8 %v294
    %v296 = vlaneseq
    %v297 = vshrl.u32 %v296, 7
    %v298 = vsub.s32 %v295, %v297
    %v299 = vrot.slane %v292, %v298
    %v301 = vadd.f32 %v291, %v299
    %v302 = vcombine.high %v289, %v289
    %v304 = vadd.f32 %v301, %v302
    %v305 = vcombine.high %v299, %v299
    %v307 = vadd.f32 %v304, %v305
    %308 = vst.msk [vmem:[#allocation2 + $0x9] sm:$0x1] %vm115, %v307
    %v309 = vmul.f32 %v238, %v66
    %v310 = vadd.f32 %v67, %v309
    %v313 = vunpack.c.l.s4 1966171168
    %v314 = vunpack.c.0.s8 %v313
    %v315 = vlaneseq
    %v316 = vshrl.u32 %v315, 7
    %v317 = vsub.s32 %v314, %v316
    %v318 = vrot.slane %v309, %v317
    %v319 = vcombine.high %v318, %v318
    %v321 = vunpack.c.l.s4 1966171168
    %v322 = vunpack.c.0.s8 %v321
    %v323 = vlaneseq
    %v324 = vshrl.u32 %v323, 7
    %v325 = vsub.s32 %v322, %v324
    %v326 = vrot.slane %v318, %v325
    %v328 = vunpack.c.l.s4 1966171168
    %v329 = vunpack.c.0.s8 %v328
    %v330 = vlaneseq
    %v331 = vshrl.u32 %v330, 7
    %v332 = vsub.s32 %v329, %v331
    %v333 = vrot.slane %v319, %v332
    %v335 = vadd.f32 %v310, %v333
    %v336 = vcombine.high %v326, %v326
    %v338 = vadd.f32 %v335, %v336
    %v339 = vcombine.high %v333, %v333
    %v341 = vadd.f32 %v338, %v339
    %342 = vst.msk [vmem:[#allocation2 + $0xa] sm:$0x1] %vm115, %v341
    %v343 = vmul.f32 %v238, %v118
    %v345 = vcombine.high %v343, %v343
    %v347 = vunpack.c.l.s4 1966171168
    %v348 = vunpack.c.0.s8 %v347
    %v349 = vlaneseq
    %v350 = vshrl.u32 %v349, 7
    %v351 = vsub.s32 %v348, %v350
    %v352 = vrot.slane %v345, %v351
    %v354 = vunpack.c.l.s4 1966171168
    %v355 = vunpack.c.0.s8 %v354
    %v356 = vlaneseq
    %v357 = vshrl.u32 %v356, 7
    %v358 = vsub.s32 %v355, %v357
    %v359 = vrot.slane %v352, %v358
    %v361 = vadd.f32 %v67, %v359
    %v362 = vcombine.high %v352, %v352
    %v364 = vunpack.c.l.s4 1966171168
    %v365 = vunpack.c.0.s8 %v364
    %v366 = vlaneseq
    %v367 = vshrl.u32 %v366, 7
    %v368 = vsub.s32 %v365, %v367
    %v369 = vrot.slane %v362, %v368
    %v371 = vadd.f32 %v361, %v369
    %v372 = vcombine.high %v359, %v359
    %v374 = vadd.f32 %v371, %v372
    %v375 = vcombine.high %v369, %v369
    %v377 = vadd.f32 %v374, %v375
    %378 = vst.msk [vmem:[#allocation2 + $0xb] sm:$0x1] %vm115, %v377
    %s379 = sld [smem:[#allocation3]]
    %v380 = vstv %s379
    %v381 = vmul.f32 %v380, %v228
    %s382 = sld [smem:[#allocation3 + $0x80]]
    %v383 = vstv %s382
    %v384 = vmul.f32 %v383, %v228
    %s385 = sld [smem:[#allocation3 + $0x100]]
    %v386 = vstv %s385
    %v387 = vmul.f32 %v386, %v228
    %s388 = sld [smem:[#allocation3 + $0x180]]
    %v389 = vstv %s388
    %v390 = vmul.f32 %v389, %v228
    %s391 = sld [smem:[#allocation3 + $0x1]]
    %v392 = vstv %s391
    %v393 = vmul.f32 %v392, %v228
    %v395 = vrot.slane %v393, 1
    %v397 = vadd.f32 %v381, %v395
    %s398 = sld [smem:[#allocation3 + $0x81]]
    %v399 = vstv %s398
    %v400 = vmul.f32 %v399, %v228
    %v402 = vrot.slane %v400, 1
    %v404 = vadd.f32 %v384, %v402
    %s405 = sld [smem:[#allocation3 + $0x101]]
    %v406 = vstv %s405
    %v407 = vmul.f32 %v406, %v228
    %v409 = vrot.slane %v407, 1
    %v411 = vadd.f32 %v387, %v409
    %s412 = sld [smem:[#allocation3 + $0x181]]
    %v413 = vstv %s412
    %v414 = vmul.f32 %v413, %v228
    %v416 = vrot.slane %v414, 1
    %v418 = vadd.f32 %v390, %v416
    %s419 = sld [smem:[#allocation3 + $0x2]]
    %v420 = vstv %s419
    %v421 = vmul.f32 %v420, %v228
    %v423 = vrot.slane %v421, 2
    %v425 = vadd.f32 %v397, %v423
    %s426 = sld [smem:[#allocation3 + $0x82]]
    %v427 = vstv %s426
    %v428 = vmul.f32 %v427, %v228
    %v430 = vrot.slane %v428, 2
    %v432 = vadd.f32 %v404, %v430
    %s433 = sld [smem:[#allocation3 + $0x102]]
    %v434 = vstv %s433
    %v435 = vmul.f32 %v434, %v228
    %v437 = vrot.slane %v435, 2
    %v439 = vadd.f32 %v411, %v437
    %s440 = sld [smem:[#allocation3 + $0x182]]
    %v441 = vstv %s440
    %v442 = vmul.f32 %v441, %v228
    %v444 = vrot.slane %v442, 2
    %v446 = vadd.f32 %v418, %v444
    %s447 = sld [smem:[#allocation3 + $0x3]]
    %v448 = vstv %s447
    %v449 = vmul.f32 %v448, %v228
    %v451 = vrot.slane %v449, 3
    %v453 = vadd.f32 %v425, %v451
    %s454 = sld [smem:[#allocation3 + $0x83]]
    %v455 = vstv %s454
    %v456 = vmul.f32 %v455, %v228
    %v458 = vrot.slane %v456, 3
    %v460 = vadd.f32 %v432, %v458
    %s461 = sld [smem:[#allocation3 + $0x103]]
    %v462 = vstv %s461
    %v463 = vmul.f32 %v462, %v228
    %v465 = vrot.slane %v463, 3
    %v467 = vadd.f32 %v439, %v465
    %s468 = sld [smem:[#allocation3 + $0x183]]
    %v469 = vstv %s468
    %v470 = vmul.f32 %v469, %v228
    %v472 = vrot.slane %v470, 3
    %v474 = vadd.f32 %v446, %v472
    %s475 = sld [smem:[#allocation7]]
    %v476 = vstv %s475
    %v477 = vadd.f32 %v453, %v476
    %v478 = vpack.c.bf16 %v477, %v477
    %vm479 = vcmask 516096
    %vm480 = vsmask.f32 256
    %vm481 = vmand %vm479, %vm480
    %v482 = vld [vmem:[#allocation9] sm:$0x1]
    %v483 = vsel %vm481, %v478, %v482
    %484 = vst [vmem:[#allocation9] sm:$0x1] %v483
    %s485 = sld [smem:[#allocation7 + $0x1]]
    %v486 = vstv %s485
    %v487 = vadd.f32 %v460, %v486
    %v488 = vpack.c.bf16 %v487, %v487
    %v490 = vunpack.c.l.b16 %v488
    %v491 = vpack.c.b16 %v490, %v490
    %v493 = vshll.u32 %v491, 16
    %vm496 = vsmask.f32 7938
    %vm497 = vmand %vm479, %vm496
    %v498 = vld [vmem:[#allocation9] sm:$0x1]
    %v499 = vsel %vm497, %v493, %v498
    %500 = vst [vmem:[#allocation9] sm:$0x1] %v499
    %s501 = sld [smem:[#allocation7 + $0x2]]
    %v502 = vstv %s501
    %v503 = vadd.f32 %v467, %v502
    %v504 = vpack.c.bf16 %v503, %v503
    %v506 = vunpack.c.l.b16 %v504
    %v507 = vpack.c.b16 %v506, %v506
    %v508 = vrot.slane %v507, 7
    %vm510 = vcmask 517121
    %vm511 = vsmask.f32 1280
    %vm512 = vmand %vm510, %vm511
    %v513 = vld [vmem:[#allocation9] sm:$0x2]
    %v514 = vsel %vm512, %v508, %v513
    %515 = vst [vmem:[#allocation9] sm:$0x2] %v514
    %s516 = sld [smem:[#allocation7 + $0x3]]
    %v517 = vstv %s516
    %v518 = vadd.f32 %v474, %v517
    %v519 = vpack.c.bf16 %v518, %v518
    %v521 = vunpack.c.l.b16 %v519
    %v522 = vpack.c.b16 %v521, %v521
    %v524 = vshll.u32 %v522, 16
    %v526 = vrot.slane %v524, 7
    %vm528 = vsmask.f32 7942
    %vm529 = vmand %vm510, %vm528
    %v530 = vld [vmem:[#allocation9] sm:$0x2]
    %v531 = vsel %vm529, %v526, %v530
    %532 = vst [vmem:[#allocation9] sm:$0x2] %v531
    %s533 = sld [smem:[#allocation3]]
    %v534 = vstv %s533
    %v535 = vmul.f32 %v534, %v228
    %s536 = sld [smem:[#allocation3 + $0x80]]
    %v537 = vstv %s536
    %v538 = vmul.f32 %v537, %v228
    %s539 = sld [smem:[#allocation3 + $0x100]]
    %v540 = vstv %s539
    %v541 = vmul.f32 %v540, %v228
    %s542 = sld [smem:[#allocation3 + $0x180]]
    %v543 = vstv %s542
    %v544 = vmul.f32 %v543, %v228
    %s545 = sld [smem:[#allocation3 + $0x1]]
    %v546 = vstv %s545
    %v547 = vmul.f32 %v546, %v228
    %v549 = vrot.slane %v547, 1
    %v551 = vadd.f32 %v535, %v549
    %s552 = sld [smem:[#allocation3 + $0x81]]
    %v553 = vstv %s552
    %v554 = vmul.f32 %v553, %v228
    %v556 = vrot.slane %v554, 1
    %v558 = vadd.f32 %v538, %v556
    %s559 = sld [smem:[#allocation3 + $0x101]]
    %v560 = vstv %s559
    %v561 = vmul.f32 %v560, %v228
    %v563 = vrot.slane %v561, 1
    %v565 = vadd.f32 %v541, %v563
    %s566 = sld [smem:[#allocation3 + $0x181]]
    %v567 = vstv %s566
    %v568 = vmul.f32 %v567, %v228
    %v570 = vrot.slane %v568, 1
    %v572 = vadd.f32 %v544, %v570
    %s573 = sld [smem:[#allocation3 + $0x2]]
    %v574 = vstv %s573
    %v575 = vmul.f32 %v574, %v228
    %v577 = vrot.slane %v575, 2
    %v579 = vadd.f32 %v551, %v577
    %s580 = sld [smem:[#allocation3 + $0x82]]
    %v581 = vstv %s580
    %v582 = vmul.f32 %v581, %v228
    %v584 = vrot.slane %v582, 2
    %v586 = vadd.f32 %v558, %v584
    %s587 = sld [smem:[#allocation3 + $0x102]]
    %v588 = vstv %s587
    %v589 = vmul.f32 %v588, %v228
    %v591 = vrot.slane %v589, 2
    %v593 = vadd.f32 %v565, %v591
    %s594 = sld [smem:[#allocation3 + $0x182]]
    %v595 = vstv %s594
    %v596 = vmul.f32 %v595, %v228
    %v598 = vrot.slane %v596, 2
    %v600 = vadd.f32 %v572, %v598
    %s601 = sld [smem:[#allocation3 + $0x3]]
    %v602 = vstv %s601
    %v603 = vmul.f32 %v602, %v228
    %v605 = vrot.slane %v603, 3
    %v607 = vadd.f32 %v579, %v605
    %s608 = sld [smem:[#allocation3 + $0x83]]
    %v609 = vstv %s608
    %v610 = vmul.f32 %v609, %v228
    %v612 = vrot.slane %v610, 3
    %v614 = vadd.f32 %v586, %v612
    %s615 = sld [smem:[#allocation3 + $0x103]]
    %v616 = vstv %s615
    %v617 = vmul.f32 %v616, %v228
    %v619 = vrot.slane %v617, 3
    %v621 = vadd.f32 %v593, %v619
    %s622 = sld [smem:[#allocation3 + $0x183]]
    %v623 = vstv %s622
    %v624 = vmul.f32 %v623, %v228
    %v626 = vrot.slane %v624, 3
    %v628 = vadd.f32 %v600, %v626
    %s629 = sld [smem:[#allocation7]]
    %v630 = vstv %s629
    %v631 = vadd.f32 %v607, %v630
    %v632 = vpack.c.bf16 %v631, %v631
    %vm633 = vcmask 518146
    %vm634 = vsmask.f32 2304
    %vm635 = vmand %vm633, %vm634
    %v636 = vld [vmem:[#allocation9] sm:$0x4]
    %v637 = vsel %vm635, %v632, %v636
    %638 = vst [vmem:[#allocation9] sm:$0x4] %v637
    %s639 = sld [smem:[#allocation7 + $0x1]]
    %v640 = vstv %s639
    %v641 = vadd.f32 %v614, %v640
    %v642 = vpack.c.bf16 %v641, %v641
    %v644 = vunpack.c.l.b16 %v642
    %v645 = vpack.c.b16 %v644, %v644
    %v647 = vshll.u32 %v645, 16
    %vm650 = vsmask.f32 7946
    %vm651 = vmand %vm633, %vm650
    %v652 = vld [vmem:[#allocation9] sm:$0x4]
    %v653 = vsel %vm651, %v647, %v652
    %654 = vst [vmem:[#allocation9] sm:$0x4] %v653
    %s655 = sld [smem:[#allocation7 + $0x2]]
    %v656 = vstv %s655
    %v657 = vadd.f32 %v621, %v656
    %v658 = vpack.c.bf16 %v657, %v657
    %v660 = vunpack.c.l.b16 %v658
    %v661 = vpack.c.b16 %v660, %v660
    %v662 = vrot.slane %v661, 7
    %vm664 = vcmask 519171
    %vm665 = vsmask.f32 3328
    %vm666 = vmand %vm664, %vm665
    %v667 = vld [vmem:[#allocation9] sm:$0x8]
    %v668 = vsel %vm666, %v662, %v667
    %669 = vst [vmem:[#allocation9] sm:$0x8] %v668
    %s670 = sld [smem:[#allocation7 + $0x3]]
    %v671 = vstv %s670
    %v672 = vadd.f32 %v628, %v671
    %v673 = vpack.c.bf16 %v672, %v672
    %v675 = vunpack.c.l.b16 %v673
    %v676 = vpack.c.b16 %v675, %v675
    %v678 = vshll.u32 %v676, 16
    %v680 = vrot.slane %v678, 7
    %vm682 = vsmask.f32 7950
    %vm683 = vmand %vm664, %vm682
    %v684 = vld [vmem:[#allocation9] sm:$0x8]
    %v685 = vsel %vm683, %v680, %v684
    %686 = vst [vmem:[#allocation9] sm:$0x8] %v685
    %s687 = sld [smem:[#allocation3]]
    %v688 = vstv %s687
    %v689 = vmul.f32 %v688, %v229
    %s690 = sld [smem:[#allocation3 + $0x80]]
    %v691 = vstv %s690
    %v692 = vmul.f32 %v691, %v229
    %s693 = sld [smem:[#allocation3 + $0x100]]
    %v694 = vstv %s693
    %v695 = vmul.f32 %v694, %v229
    %s696 = sld [smem:[#allocation3 + $0x180]]
    %v697 = vstv %s696
    %v698 = vmul.f32 %v697, %v229
    %s699 = sld [smem:[#allocation3 + $0x1]]
    %v700 = vstv %s699
    %v701 = vmul.f32 %v700, %v229
    %v703 = vrot.slane %v701, 1
    %v705 = vadd.f32 %v689, %v703
    %s706 = sld [smem:[#allocation3 + $0x81]]
    %v707 = vstv %s706
    %v708 = vmul.f32 %v707, %v229
    %v710 = vrot.slane %v708, 1
    %v712 = vadd.f32 %v692, %v710
    %s713 = sld [smem:[#allocation3 + $0x101]]
    %v714 = vstv %s713
    %v715 = vmul.f32 %v714, %v229
    %v717 = vrot.slane %v715, 1
    %v719 = vadd.f32 %v695, %v717
    %s720 = sld [smem:[#allocation3 + $0x181]]
    %v721 = vstv %s720
    %v722 = vmul.f32 %v721, %v229
    %v724 = vrot.slane %v722, 1
    %v726 = vadd.f32 %v698, %v724
    %s727 = sld [smem:[#allocation3 + $0x2]]
    %v728 = vstv %s727
    %v729 = vmul.f32 %v728, %v229
    %v731 = vrot.slane %v729, 2
    %v733 = vadd.f32 %v705, %v731
    %s734 = sld [smem:[#allocation3 + $0x82]]
    %v735 = vstv %s734
    %v736 = vmul.f32 %v735, %v229
    %v738 = vrot.slane %v736, 2
    %v740 = vadd.f32 %v712, %v738
    %s741 = sld [smem:[#allocation3 + $0x102]]
    %v742 = vstv %s741
    %v743 = vmul.f32 %v742, %v229
    %v745 = vrot.slane %v743, 2
    %v747 = vadd.f32 %v719, %v745
    %s748 = sld [smem:[#allocation3 + $0x182]]
    %v749 = vstv %s748
    %v750 = vmul.f32 %v749, %v229
    %v752 = vrot.slane %v750, 2
    %v754 = vadd.f32 %v726, %v752
    %s755 = sld [smem:[#allocation3 + $0x3]]
    %v756 = vstv %s755
    %v757 = vmul.f32 %v756, %v229
    %v759 = vrot.slane %v757, 3
    %v761 = vadd.f32 %v733, %v759
    %s762 = sld [smem:[#allocation3 + $0x83]]
    %v763 = vstv %s762
    %v764 = vmul.f32 %v763, %v229
    %v766 = vrot.slane %v764, 3
    %v768 = vadd.f32 %v740, %v766
    %s769 = sld [smem:[#allocation3 + $0x103]]
    %v770 = vstv %s769
    %v771 = vmul.f32 %v770, %v229
    %v773 = vrot.slane %v771, 3
    %v775 = vadd.f32 %v747, %v773
    %s776 = sld [smem:[#allocation3 + $0x183]]
    %v777 = vstv %s776
    %v778 = vmul.f32 %v777, %v229
    %v780 = vrot.slane %v778, 3
    %v782 = vadd.f32 %v754, %v780
    %s783 = sld [smem:[#allocation7]]
    %v784 = vstv %s783
    %v785 = vadd.f32 %v761, %v784
    %v786 = vpack.c.bf16 %v785, %v785
    %v787 = vld [vmem:[#allocation9 + $0x4] sm:$0x1]
    %v788 = vsel %vm481, %v786, %v787
    %789 = vst [vmem:[#allocation9 + $0x4] sm:$0x1] %v788
    %s790 = sld [smem:[#allocation7 + $0x1]]
    %v791 = vstv %s790
    %v792 = vadd.f32 %v768, %v791
    %v793 = vpack.c.bf16 %v792, %v792
    %v795 = vunpack.c.l.b16 %v793
    %v796 = vpack.c.b16 %v795, %v795
    %v798 = vshll.u32 %v796, 16
    %v801 = vld [vmem:[#allocation9 + $0x4] sm:$0x1]
    %v802 = vsel %vm497, %v798, %v801
    %803 = vst [vmem:[#allocation9 + $0x4] sm:$0x1] %v802
    %s804 = sld [smem:[#allocation7 + $0x2]]
    %v805 = vstv %s804
    %v806 = vadd.f32 %v775, %v805
    %v807 = vpack.c.bf16 %v806, %v806
    %v809 = vunpack.c.l.b16 %v807
    %v810 = vpack.c.b16 %v809, %v809
    %v811 = vrot.slane %v810, 7
    %v813 = vld [vmem:[#allocation9 + $0x4] sm:$0x2]
    %v814 = vsel %vm512, %v811, %v813
    %815 = vst [vmem:[#allocation9 + $0x4] sm:$0x2] %v814
    %s816 = sld [smem:[#allocation7 + $0x3]]
    %v817 = vstv %s816
    %v818 = vadd.f32 %v782, %v817
    %v819 = vpack.c.bf16 %v818, %v818
    %v821 = vunpack.c.l.b16 %v819
    %v822 = vpack.c.b16 %v821, %v821
    %v824 = vshll.u32 %v822, 16
    %v826 = vrot.slane %v824, 7
    %v828 = vld [vmem:[#allocation9 + $0x4] sm:$0x2]
    %v829 = vsel %vm529, %v826, %v828
    %830 = vst [vmem:[#allocation9 + $0x4] sm:$0x2] %v829
    %s831 = sld [smem:[#allocation3]]
    %v832 = vstv %s831
    %v833 = vmul.f32 %v832, %v229
    %s834 = sld [smem:[#allocation3 + $0x80]]
    %v835 = vstv %s834
    %v836 = vmul.f32 %v835, %v229
    %s837 = sld [smem:[#allocation3 + $0x100]]
    %v838 = vstv %s837
    %v839 = vmul.f32 %v838, %v229
    %s840 = sld [smem:[#allocation3 + $0x180]]
    %v841 = vstv %s840
    %v842 = vmul.f32 %v841, %v229
    %s843 = sld [smem:[#allocation3 + $0x1]]
    %v844 = vstv %s843
    %v845 = vmul.f32 %v844, %v229
    %v847 = vrot.slane %v845, 1
    %v849 = vadd.f32 %v833, %v847
    %s850 = sld [smem:[#allocation3 + $0x81]]
    %v851 = vstv %s850
    %v852 = vmul.f32 %v851, %v229
    %v854 = vrot.slane %v852, 1
    %v856 = vadd.f32 %v836, %v854
    %s857 = sld [smem:[#allocation3 + $0x101]]
    %v858 = vstv %s857
    %v859 = vmul.f32 %v858, %v229
    %v861 = vrot.slane %v859, 1
    %v863 = vadd.f32 %v839, %v861
    %s864 = sld [smem:[#allocation3 + $0x181]]
    %v865 = vstv %s864
    %v866 = vmul.f32 %v865, %v229
    %v868 = vrot.slane %v866, 1
    %v870 = vadd.f32 %v842, %v868
    %s871 = sld [smem:[#allocation3 + $0x2]]
    %v872 = vstv %s871
    %v873 = vmul.f32 %v872, %v229
    %v875 = vrot.slane %v873, 2
    %v877 = vadd.f32 %v849, %v875
    %s878 = sld [smem:[#allocation3 + $0x82]]
    %v879 = vstv %s878
    %v880 = vmul.f32 %v879, %v229
    %v882 = vrot.slane %v880, 2
    %v884 = vadd.f32 %v856, %v882
    %s885 = sld [smem:[#allocation3 + $0x102]]
    %v886 = vstv %s885
    %v887 = vmul.f32 %v886, %v229
    %v889 = vrot.slane %v887, 2
    %v891 = vadd.f32 %v863, %v889
    %s892 = sld [smem:[#allocation3 + $0x182]]
    %v893 = vstv %s892
    %v894 = vmul.f32 %v893, %v229
    %v896 = vrot.slane %v894, 2
    %v898 = vadd.f32 %v870, %v896
    %s899 = sld [smem:[#allocation3 + $0x3]]
    %v900 = vstv %s899
    %v901 = vmul.f32 %v900, %v229
    %v903 = vrot.slane %v901, 3
    %v905 = vadd.f32 %v877, %v903
    %s906 = sld [smem:[#allocation3 + $0x83]]
    %v907 = vstv %s906
    %v908 = vmul.f32 %v907, %v229
    %v910 = vrot.slane %v908, 3
    %v912 = vadd.f32 %v884, %v910
    %s913 = sld [smem:[#allocation3 + $0x103]]
    %v914 = vstv %s913
    %v915 = vmul.f32 %v914, %v229
    %v917 = vrot.slane %v915, 3
    %v919 = vadd.f32 %v891, %v917
    %s920 = sld [smem:[#allocation3 + $0x183]]
    %v921 = vstv %s920
    %v922 = vmul.f32 %v921, %v229
    %v924 = vrot.slane %v922, 3
    %v926 = vadd.f32 %v898, %v924
    %s927 = sld [smem:[#allocation7]]
    %v928 = vstv %s927
    %v929 = vadd.f32 %v905, %v928
    %v930 = vpack.c.bf16 %v929, %v929
    %v931 = vld [vmem:[#allocation9 + $0x4] sm:$0x4]
    %v932 = vsel %vm635, %v930, %v931
    %933 = vst [vmem:[#allocation9 + $0x4] sm:$0x4] %v932
    %s934 = sld [smem:[#allocation7 + $0x1]]
    %v935 = vstv %s934
    %v936 = vadd.f32 %v912, %v935
    %v937 = vpack.c.bf16 %v936, %v936
    %v939 = vunpack.c.l.b16 %v937
    %v940 = vpack.c.b16 %v939, %v939
    %v942 = vshll.u32 %v940, 16
    %v945 = vld [vmem:[#allocation9 + $0x4] sm:$0x4]
    %v946 = vsel %vm651, %v942, %v945
    %947 = vst [vmem:[#allocation9 + $0x4] sm:$0x4] %v946
    %s948 = sld [smem:[#allocation7 + $0x2]]
    %v949 = vstv %s948
    %v950 = vadd.f32 %v919, %v949
    %v951 = vpack.c.bf16 %v950, %v950
    %v953 = vunpack.c.l.b16 %v951
    %v954 = vpack.c.b16 %v953, %v953
    %v955 = vrot.slane %v954, 7
    %v957 = vld [vmem:[#allocation9 + $0x4] sm:$0x8]
    %v958 = vsel %vm666, %v955, %v957
    %959 = vst [vmem:[#allocation9 + $0x4] sm:$0x8] %v958
    %s960 = sld [smem:[#allocation7 + $0x3]]
    %v961 = vstv %s960
    %v962 = vadd.f32 %v926, %v961
    %v963 = vpack.c.bf16 %v962, %v962
    %v965 = vunpack.c.l.b16 %v963
    %v966 = vpack.c.b16 %v965, %v965
    %v968 = vshll.u32 %v966, 16
    %v970 = vrot.slane %v968, 7
    %v972 = vld [vmem:[#allocation9 + $0x4] sm:$0x8]
    %v973 = vsel %vm683, %v970, %v972
    %974 = vst [vmem:[#allocation9 + $0x4] sm:$0x8] %v973
    %v975 = vld [vmem:[#allocation2] sm:$0xff]
    %v976 = vld [vmem:[#allocation2 + $0x8] sm:$0xff]
    %v977 = vpack.c.bf16 %v976, %v975
    %v978 = vld [vmem:[%s6] sm:$0xf]
    %v979 = vld [vmem:[%s6 + $0x4] sm:$0xf]
    %v980 = vld [vmem:[%s6 + $0x8] sm:$0xf]
    %v981 = vld [vmem:[%s6 + $0xc] sm:$0xf]
    %v982 = vld [vmem:[%s7] sm:$0x1]
    %v984 = vlaneseq
    %v985 = vshrl.u32 %v984, 7
    %v986 = vsub.s32 0, %v985
    %v987 = vrot.slane %v982, %v986
    %v993 = vunpack.c.l.b16 %v978
    %v994 = vunpack.c.l.b16 %v979
    %v995 = vunpack.c.l.b16 %v980
    %v996 = vunpack.c.l.b16 %v981
    %v997 = vpack.c.b16 %v994, %v993
    %v998 = vpack.c.b16 %v996, %v995
    %v1002 = vsel %vm63, %v977, 0
    %1004 = vmatprep.subr.bf16.mxu0 0
    %1005 = vmatpush1.bf16.msra.mxu0 %v997
    %1006 = vmatprep.subr.bf16.mxu0 0
    %1007 = vmatpush1.bf16.msra.mxu0 %v998
    %1008 = vmatprep.subr.bf16.mxu0 0
    %1009 = vmatpush1.bf16.msra.mxu0 0
    %1010 = vmatprep.subr.bf16.mxu0 0
    %1011 = vmatpush1.bf16.msra.mxu0 0
    %1012 = vmatprep.subr.bf16.mxu0 0
    %1013 = vmatpush1.bf16.msra.mxu0 0
    %1014 = vmatprep.subr.bf16.mxu0 0
    %1015 = vmatpush1.bf16.msra.mxu0 0
    %1016 = vmatprep.subr.bf16.mxu0 0
    %1017 = vmatpush1.bf16.msra.mxu0 0
    %1018 = vmatprep.subr.bf16.mxu0 0
    %1019 = vmatpush1.bf16.msra.mxu0 0
    %1020 = vmatprep.subr.bf16.mxu0 0
    %1021 = vmatpush1.bf16.msra.mxu0 0
    %1022 = vmatprep.subr.bf16.mxu0 0
    %1023 = vmatpush1.bf16.msra.mxu0 0
    %1024 = vmatprep.subr.bf16.mxu0 0
    %1025 = vmatpush1.bf16.msra.mxu0 0
    %1026 = vmatprep.subr.bf16.mxu0 0
    %1027 = vmatpush1.bf16.msra.mxu0 0
    %1028 = vmatprep.subr.bf16.mxu0 0
    %1029 = vmatpush1.bf16.msra.mxu0 0
    %1030 = vmatprep.subr.bf16.mxu0 0
    %1031 = vmatpush1.bf16.msra.mxu0 0
    %1032 = vmatprep.subr.bf16.mxu0 0
    %1033 = vmatpush1.bf16.msra.mxu0 0
    %1034 = vmatprep.subr.bf16.mxu0 0
    %1035 = vmatpush1.bf16.msra.mxu0 0
    %1036 = vmatprep.mubr.bf16.mxu0 0
    %1037 = vmatmul.mubr.bf16.gmra.mrb[0].mxu0 %v1002
    %v1038 = vpop.f32.mrb[0].mxu0
    %v1039 = vadd.f32 %v987, %v1038
    %v1040 = vpop.f32.mrb[0].mxu0
    %v1041 = vpop.f32.mrb[0].mxu0
    %v1042 = vadd.f32 %v987, %v1041
    %v1043 = vpop.f32.mrb[0].mxu0
    %1044 = vdwg.mxu0
    %v1045 = vmul.f32 %v1039, %v1039
    %v1046 = vmul.f32 %v1042, %v1042
    %v1047 = vmul.f32 %v1039, %v1045
    %v1048 = vmul.f32 %v1042, %v1046
    %v1049 = vmul.f32 %v1047, 0.044715
    %v1050 = vmul.f32 %v1048, 0.044715
    %v1051 = vadd.f32 %v1039, %v1049
    %v1052 = vadd.f32 %v1042, %v1050
    %v1053 = vmul.f32 %v1051, 0.7978846
    %v1054 = vmul.f32 %v1052, 0.7978846
    %v1055 = vtanh.pop %v1053
    %v1056 = vtanh.pop %v1054
    %v1057 = vadd.f32 %v1055, 1.0
    %v1058 = vadd.f32 %v1056, 1.0
    %v1059 = vmul.f32 %v1057, 0.5
    %v1060 = vmul.f32 %v1058, 0.5
    %v1061 = vmul.f32 %v1039, %v1059
    %v1062 = vmul.f32 %v1042, %v1060
    %v1063 = vpack.c.bf16 %v1062, %v1061
    %v1064 = vld [vmem:[%s8] sm:$0xf]
    %v1065 = vld [vmem:[%s8 + $0x4] sm:$0xf]
    %v1066 = vld [vmem:[%s8 + $0x8] sm:$0xf]
    %v1067 = vld [vmem:[%s8 + $0xc] sm:$0xf]
    %v1068 = vld [vmem:[%s8 + $0x10] sm:$0xf]
    %v1069 = vld [vmem:[%s8 + $0x14] sm:$0xf]
    %v1070 = vld [vmem:[%s8 + $0x18] sm:$0xf]
    %v1071 = vld [vmem:[%s8 + $0x1c] sm:$0xf]
    %v1072 = vld [vmem:[%s9] sm:$0x1]
    %v1074 = vlaneseq
    %v1075 = vshrl.u32 %v1074, 7
    %v1076 = vsub.s32 0, %v1075
    %v1077 = vrot.slane %v1072, %v1076
    %v1087 = vunpack.c.l.b16 %v1064
    %v1088 = vunpack.c.l.b16 %v1065
    %v1089 = vunpack.c.l.b16 %v1066
    %v1090 = vunpack.c.l.b16 %v1067
    %v1091 = vunpack.c.l.b16 %v1068
    %v1092 = vunpack.c.l.b16 %v1069
    %v1093 = vunpack.c.l.b16 %v1070
    %v1094 = vunpack.c.l.b16 %v1071
    %v1095 = vpack.c.b16 %v1088, %v1087
    %v1096 = vpack.c.b16 %v1090, %v1089
    %v1097 = vpack.c.b16 %v1092, %v1091
    %v1098 = vpack.c.b16 %v1094, %v1093
    %v1104 = vsel %vm230, %v1063, 0
    %1106 = vmatprep.subr.bf16.mxu0 0
    %1107 = vmatpush1.bf16.msra.mxu0 %v1095
    %1108 = vmatprep.subr.bf16.mxu0 0
    %1109 = vmatpush1.bf16.msra.mxu0 %v1096
    %1110 = vmatprep.subr.bf16.mxu0 0
    %1111 = vmatpush1.bf16.msra.mxu0 %v1097
    %1112 = vmatprep.subr.bf16.mxu0 0
    %1113 = vmatpush1.bf16.msra.mxu0 %v1098
    %1114 = vmatprep.subr.bf16.mxu0 0
    %1115 = vmatpush1.bf16.msra.mxu0 0
    %1116 = vmatprep.subr.bf16.mxu0 0
    %1117 = vmatpush1.bf16.msra.mxu0 0
    %1118 = vmatprep.subr.bf16.mxu0 0
    %1119 = vmatpush1.bf16.msra.mxu0 0
    %1120 = vmatprep.subr.bf16.mxu0 0
    %1121 = vmatpush1.bf16.msra.mxu0 0
    %1122 = vmatprep.subr.bf16.mxu0 0
    %1123 = vmatpush1.bf16.msra.mxu0 0
    %1124 = vmatprep.subr.bf16.mxu0 0
    %1125 = vmatpush1.bf16.msra.mxu0 0
    %1126 = vmatprep.subr.bf16.mxu0 0
    %1127 = vmatpush1.bf16.msra.mxu0 0
    %1128 = vmatprep.subr.bf16.mxu0 0
    %1129 = vmatpush1.bf16.msra.mxu0 0
    %1130 = vmatprep.subr.bf16.mxu0 0
    %1131 = vmatpush1.bf16.msra.mxu0 0
    %1132 = vmatprep.subr.bf16.mxu0 0
    %1133 = vmatpush1.bf16.msra.mxu0 0
    %1134 = vmatprep.subr.bf16.mxu0 0
    %1135 = vmatpush1.bf16.msra.mxu0 0
    %1136 = vmatprep.subr.bf16.mxu0 0
    %1137 = vmatpush1.bf16.msra.mxu0 0
    %1138 = vmatprep.mubr.bf16.mxu0 0
    %1139 = vmatmul.mubr.bf16.gmra.mrb[0].mxu0 %v1104
    %v1140 = vpop.f32.mrb[0].mxu0
    %v1141 = vadd.f32 %v1077, %v1140
    %v1142 = vpop.f32.mrb[0].mxu0
    %v1143 = vpop.f32.mrb[0].mxu0
    %v1144 = vadd.f32 %v1077, %v1143
    %v1145 = vpop.f32.mrb[0].mxu0
    %1146 = vdwg.mxu0
    %vm1147 = vcmask 125952
    %1148 = vst.msk [vmem:[#allocation8] sm:$0xf] %vm1147, %v1141
    %1149 = vst.msk [vmem:[#allocation8 + $0x4] sm:$0xf] %vm1147, %v1144
    // Predicated region
    $region50: #{tpu_custom_call.1} parent=1 // pred_check
      _
    $region51: #{tpu_custom_call.1} parent=1 // pred_check_branch
      %1151 = sbr.rel (0) target = $region53
    $region52: #{tpu_custom_call.1} parent=1 // pred_region
      %s1153 = ssub.s32 128, 128
      %1154 = vsyncadd [#allocation4], %s1153
      %s1156 = sshll.u32 [#allocation8], 4
      %s1157 = int_to_ptr.vmem [resolvable:$true] %s1156
      %1159 = dma.vmem_to_hbm [thread:$0]  %s1157, 128, %s10, [#allocation4]
    $region53: #{tpu_custom_call.1} parent=1 // pred_fallthru
      _
    // Predicated region
    $region54: #{tpu_custom_call.1} parent=1 // pred_check
      _
    $region55: #{tpu_custom_call.1} parent=1 // pred_check_branch
      %1161 = sbr.rel (0) target = $region57
    $region56: #{tpu_custom_call.1} parent=1 // pred_region
      %s1163 = ssub.s32 128, 128
      %1164 = vsyncadd [#allocation10], %s1163
      %s1165 = sshll.u32 [#allocation9], 4
      %s1166 = int_to_ptr.vmem [resolvable:$true] %s1165
      %1171 = dma.vmem_to_hbm [thread:$0]  %s1166, 128, %s11, [#allocation10], 64, 64, 4
    $region57: #{tpu_custom_call.1} parent=1 // pred_fallthru
      _
    // Predicated region
    $region58: #{tpu_custom_call.1} parent=1 // pred_check
      _
    $region59: #{tpu_custom_call.1} parent=1 // pred_check_branch
      %1173 = sbr.rel (0) target = $region61
    $region60: #{tpu_custom_call.1} parent=1 // pred_region
      %1174 = dma.done [#allocation4], 128
    $region61: #{tpu_custom_call.1} parent=1 // pred_fallthru
      _
    // Predicated region
    $region62: #{tpu_custom_call.1} parent=1 // pred_check
      _
    $region63: #{tpu_custom_call.1} parent=1 // pred_check_branch
      %1176 = sbr.rel (0) target = $region65
    $region64: #{tpu_custom_call.1} parent=1 // pred_region
      %1177 = dma.done [#allocation10], 128
    $region65: #{tpu_custom_call.1} parent=1 // pred_fallthru
      _
    %1178 = vsyncpa [#allocation4], 1
    %1179 = vsyncpa [#allocation10], 1
    %1180 = vsyncpa [#allocation5], 1
    %1181 = vsyncpa [#allocation6], 1

</llo_original>
